<compile_context>
chip_gen: v7x
topology: tpu7x:2x2x1
jax: 0.10.0
libtpu: 0.0.40
codegen_flags: <defaults>
</compile_context>

<pallas_src>
import jax
import jax.numpy as jnp
from jax.experimental import pallas as pl
from jax.experimental.pallas import tpu as pltpu


def spec_encoder_forward(x, conv_w, conv_b, bn_gamma, bn_beta, bn_mean, bn_var,
                         bn_eps=1e-5):
    """Pallas implementation of SpecEncoder.forward (BN in inference mode).

    Args:
      x:       (B, C_in, H, W) spectrogram.
      conv_w:  (C_out, C_in, 3, 3) conv weight (OIHW, like PyTorch).
      conv_b:  (C_out,) conv bias.
      bn_*:    BatchNorm2d gamma/beta/running_mean/running_var, all (C_out,).
    Returns:
      (B, C_out, H - 1, W) feature map (same as the PyTorch module).
    """
    B, C_in, H, W = x.shape
    C_out = conv_w.shape[0]
    H_out, W_out = H - 1, W            # F.pad adds 1 row, valid 3-conv in H: H+1-2
    Hp, Wp = H + 1, W + 2              # +1 bottom row (F.pad), +1 col each side (conv pad)
    L_out = H_out * Wp                 # flattened output rows (incl. 2 junk cols/row)
    Lp = Hp * Wp + 2                   # flattened padded input (+2 tail pad for last tap)

    f32 = jnp.float32

    # ---- Fold BatchNorm into the conv:  BN(conv(x)+b) = conv(x)*s + ((b-mean)*s+beta)
    scale = bn_gamma.astype(f32) * jax.lax.rsqrt(bn_var.astype(f32) + bn_eps)   # (C_out,)
    w_f = conv_w.astype(f32) * scale[:, None, None, None]                        # (C_out,C_in,3,3)
    b_f = (conv_b.astype(f32) - bn_mean.astype(f32)) * scale + bn_beta.astype(f32)

    # ---- Pre-pad + flatten in the wrapper (plain XLA ops).
    xp = jnp.pad(x.astype(f32), ((0, 0), (0, 0), (0, 1), (1, 1)))                # (B,C_in,Hp,Wp)
    xp_flat = jnp.pad(xp.reshape(B, C_in, Hp * Wp), ((0, 0), (0, 0), (0, 2)))    # (B,C_in,Lp)

    # Per-tap weights laid out (9, C_out, C_in): tap matmul needs no in-kernel transpose.
    w_taps = jnp.transpose(w_f, (2, 3, 0, 1)).reshape(9, C_out, C_in)            # (9,C_out,C_in)
    b_row = b_f.reshape(1, C_out)                                                # lane-dense bias

    def kernel(x_ref, w_ref, b_ref, o_ref):
        # x_ref: (1, C_in, Lp); w_ref: (9, C_out, C_in); b_ref: (1, C_out)
        # o_ref: (1, C_out, L_out)
        xf = x_ref[0]                                          # (C_in, Lp) f32
        acc = jnp.zeros((C_out, L_out), f32)
        for kh in range(3):
            for kw in range(3):
                off = kh * Wp + kw                             # static python int
                patch = xf[:, off:off + L_out]                 # (C_in, L_out), lane-dense
                wk = w_ref[kh * 3 + kw]                        # (C_out, C_in)
                acc = acc + jnp.dot(wk, patch, preferred_element_type=f32)
        acc = acc + b_ref[0][:, None]                          # folded conv+BN bias
        o_ref[0] = acc.astype(o_ref.dtype)

    out_flat = pl.pallas_call(
        kernel,
        out_shape=jax.ShapeDtypeStruct((B, C_out, L_out), x.dtype),
        grid_spec=pltpu.PrefetchScalarGridSpec(
            num_scalar_prefetch=0,
            grid=(B,),
            in_specs=[
                pl.BlockSpec((1, C_in, Lp), lambda i: (i, 0, 0)),
                pl.BlockSpec((9, C_out, C_in), lambda i: (0, 0, 0)),
                pl.BlockSpec((1, C_out), lambda i: (0, 0)),
            ],
            out_specs=pl.BlockSpec((1, C_out, L_out), lambda i: (i, 0, 0)),
        ),
        compiler_params=pltpu.CompilerParams(
            dimension_semantics=("parallel",),
        ),
    )(xp_flat, w_taps, b_row)

    # Un-flatten and drop the 2 junk columns per row introduced by flattening.
    out = out_flat.reshape(B, C_out, H_out, Wp)[:, :, :, :W_out]
    return out


def _reference_forward(x, conv_w, conv_b, gamma, beta, mean, var, eps=1e-5):
    """Pure-JAX reference matching the PyTorch module (BN in eval mode)."""
    xp = jnp.pad(x, ((0, 0), (0, 0), (0, 1), (0, 0)))          # F.pad(x, (0,0,0,1))
    y = jax.lax.conv_general_dilated(
        xp, conv_w, window_strides=(1, 1), padding=((0, 0), (1, 1)),
        dimension_numbers=("NCHW", "OIHW", "NCHW"))
    y = y + conv_b[None, :, None, None]
    y = (y - mean[None, :, None, None]) / jnp.sqrt(var[None, :, None, None] + eps)
    y = y * gamma[None, :, None, None] + beta[None, :, None, None]
    return y


if __name__ == "__main__":
    key = jax.random.PRNGKey(0)
    k1, k2, k3, k4, k5, k6, k7 = jax.random.split(key, 7)

    B, C_in, H, W = 2, 4, 17, 16      # H=17 -> output height 16 (a power of two)
    C_out = 32
    eps = 1e-5

    x = jax.random.normal(k1, (B, C_in, H, W), dtype=jnp.float32)
    conv_w = jax.random.normal(k2, (C_out, C_in, 3, 3), dtype=jnp.float32) * 0.1
    conv_b = jax.random.normal(k3, (C_out,), dtype=jnp.float32) * 0.1
    gamma = 1.0 + 0.1 * jax.random.normal(k4, (C_out,), dtype=jnp.float32)
    beta = 0.1 * jax.random.normal(k5, (C_out,), dtype=jnp.float32)
    mean = 0.1 * jax.random.normal(k6, (C_out,), dtype=jnp.float32)
    var = jax.random.uniform(k7, (C_out,), dtype=jnp.float32, minval=0.5, maxval=1.5)

    y = spec_encoder_forward(x, conv_w, conv_b, gamma, beta, mean, var, eps)
    y = jax.block_until_ready(y)

    y_ref = _reference_forward(x, conv_w, conv_b, gamma, beta, mean, var, eps)
    y_ref = jax.block_until_ready(y_ref)

    assert y.shape == (B, C_out, H - 1, W), f"unexpected output shape {y.shape}"
    max_err = float(jnp.max(jnp.abs(y - y_ref)))
    assert jnp.allclose(y, y_ref, atol=1e-4, rtol=1e-4), f"mismatch, max err {max_err}"

    print("KERNEL_OK")
</pallas_src>

<mosaic_0001>
module attributes {stable_mosaic.version = 11 : i64} {
  func.func @kernel(%arg0: i32, %arg1: memref<1x4x326xf32, #tpu.memory_space<vmem>>, %arg2: memref<9x32x4xf32, #tpu.memory_space<vmem>>, %arg3: memref<1x32xf32, #tpu.memory_space<vmem>>, %arg4: memref<1x32x288xf32, #tpu.memory_space<vmem>>) attributes {dimension_semantics = [#tpu.dimension_semantics<parallel>], iteration_bounds = array<i64: 2>, scalar_prefetch = 0 : i64, scratch_operands = 0 : i64, tpu.core_type = #tpu.core_type<tc>, window_params = [{transform_indices = @transform_0, window_bounds = array<i64: 1, 4, 326>}, {pipeline_mode = #tpu.pipeline_mode<synchronous>, transform_indices = @transform_1, window_bounds = array<i64: 9, 32, 4>}, {pipeline_mode = #tpu.pipeline_mode<synchronous>, transform_indices = @transform_2, window_bounds = array<i64: 1, 32>}, {transform_indices = @transform_3, window_bounds = array<i64: 1, 32, 288>}]} {
    %c0 = arith.constant 0 : index
    %c0_0 = arith.constant 0 : index
    %c0_1 = arith.constant 0 : index
    %0 = vector.load %arg1[%c0, %c0_0, %c0_1] : memref<1x4x326xf32, #tpu.memory_space<vmem>>, vector<1x4x326xf32>
    %1 = vector.shape_cast %0 : vector<1x4x326xf32> to vector<4x326xf32>
    %cst = arith.constant 0.000000e+00 : f32
    %2 = vector.broadcast %cst : f32 to vector<32x288xf32>
    %3 = vector.extract_strided_slice %1 {offsets = [0, 0], sizes = [4, 288], strides = [1, 1]} : vector<4x326xf32> to vector<4x288xf32>
    %c0_2 = arith.constant 0 : index
    %c0_3 = arith.constant 0 : index
    %c0_4 = arith.constant 0 : index
    %4 = vector.load %arg2[%c0_2, %c0_3, %c0_4] : memref<9x32x4xf32, #tpu.memory_space<vmem>>, vector<1x32x4xf32>
    %5 = vector.shape_cast %4 : vector<1x32x4xf32> to vector<32x4xf32>
    %cst_5 = arith.constant dense<0.000000e+00> : vector<32x288xf32>
    %6 = tpu.matmul %5, %3, %cst_5 {dimension_numbers = #tpu.dot_dimension_numbers<[1], [0], [0], [1], [0, 0, 1, 1], [], []>} : vector<32x4xf32>, vector<4x288xf32>, vector<32x288xf32> -> vector<32x288xf32>
    %7 = arith.addf %2, %6 : vector<32x288xf32>
    %8 = vector.extract_strided_slice %1 {offsets = [0, 1], sizes = [4, 288], strides = [1, 1]} : vector<4x326xf32> to vector<4x288xf32>
    %c1 = arith.constant 1 : index
    %c0_6 = arith.constant 0 : index
    %c0_7 = arith.constant 0 : index
    %9 = vector.load %arg2[%c1, %c0_6, %c0_7] : memref<9x32x4xf32, #tpu.memory_space<vmem>>, vector<1x32x4xf32>
    %10 = vector.shape_cast %9 : vector<1x32x4xf32> to vector<32x4xf32>
    %cst_8 = arith.constant dense<0.000000e+00> : vector<32x288xf32>
    %11 = tpu.matmul %10, %8, %cst_8 {dimension_numbers = #tpu.dot_dimension_numbers<[1], [0], [0], [1], [0, 0, 1, 1], [], []>} : vector<32x4xf32>, vector<4x288xf32>, vector<32x288xf32> -> vector<32x288xf32>
    %12 = arith.addf %7, %11 : vector<32x288xf32>
    %13 = vector.extract_strided_slice %1 {offsets = [0, 2], sizes = [4, 288], strides = [1, 1]} : vector<4x326xf32> to vector<4x288xf32>
    %c2 = arith.constant 2 : index
    %c0_9 = arith.constant 0 : index
    %c0_10 = arith.constant 0 : index
    %14 = vector.load %arg2[%c2, %c0_9, %c0_10] : memref<9x32x4xf32, #tpu.memory_space<vmem>>, vector<1x32x4xf32>
    %15 = vector.shape_cast %14 : vector<1x32x4xf32> to vector<32x4xf32>
    %cst_11 = arith.constant dense<0.000000e+00> : vector<32x288xf32>
    %16 = tpu.matmul %15, %13, %cst_11 {dimension_numbers = #tpu.dot_dimension_numbers<[1], [0], [0], [1], [0, 0, 1, 1], [], []>} : vector<32x4xf32>, vector<4x288xf32>, vector<32x288xf32> -> vector<32x288xf32>
    %17 = arith.addf %12, %16 : vector<32x288xf32>
    %18 = vector.extract_strided_slice %1 {offsets = [0, 18], sizes = [4, 288], strides = [1, 1]} : vector<4x326xf32> to vector<4x288xf32>
    %c3 = arith.constant 3 : index
    %c0_12 = arith.constant 0 : index
    %c0_13 = arith.constant 0 : index
    %19 = vector.load %arg2[%c3, %c0_12, %c0_13] : memref<9x32x4xf32, #tpu.memory_space<vmem>>, vector<1x32x4xf32>
    %20 = vector.shape_cast %19 : vector<1x32x4xf32> to vector<32x4xf32>
    %cst_14 = arith.constant dense<0.000000e+00> : vector<32x288xf32>
    %21 = tpu.matmul %20, %18, %cst_14 {dimension_numbers = #tpu.dot_dimension_numbers<[1], [0], [0], [1], [0, 0, 1, 1], [], []>} : vector<32x4xf32>, vector<4x288xf32>, vector<32x288xf32> -> vector<32x288xf32>
    %22 = arith.addf %17, %21 : vector<32x288xf32>
    %23 = vector.extract_strided_slice %1 {offsets = [0, 19], sizes = [4, 288], strides = [1, 1]} : vector<4x326xf32> to vector<4x288xf32>
    %c4 = arith.constant 4 : index
    %c0_15 = arith.constant 0 : index
    %c0_16 = arith.constant 0 : index
    %24 = vector.load %arg2[%c4, %c0_15, %c0_16] : memref<9x32x4xf32, #tpu.memory_space<vmem>>, vector<1x32x4xf32>
    %25 = vector.shape_cast %24 : vector<1x32x4xf32> to vector<32x4xf32>
    %cst_17 = arith.constant dense<0.000000e+00> : vector<32x288xf32>
    %26 = tpu.matmul %25, %23, %cst_17 {dimension_numbers = #tpu.dot_dimension_numbers<[1], [0], [0], [1], [0, 0, 1, 1], [], []>} : vector<32x4xf32>, vector<4x288xf32>, vector<32x288xf32> -> vector<32x288xf32>
    %27 = arith.addf %22, %26 : vector<32x288xf32>
    %28 = vector.extract_strided_slice %1 {offsets = [0, 20], sizes = [4, 288], strides = [1, 1]} : vector<4x326xf32> to vector<4x288xf32>
    %c5 = arith.constant 5 : index
    %c0_18 = arith.constant 0 : index
    %c0_19 = arith.constant 0 : index
    %29 = vector.load %arg2[%c5, %c0_18, %c0_19] : memref<9x32x4xf32, #tpu.memory_space<vmem>>, vector<1x32x4xf32>
    %30 = vector.shape_cast %29 : vector<1x32x4xf32> to vector<32x4xf32>
    %cst_20 = arith.constant dense<0.000000e+00> : vector<32x288xf32>
    %31 = tpu.matmul %30, %28, %cst_20 {dimension_numbers = #tpu.dot_dimension_numbers<[1], [0], [0], [1], [0, 0, 1, 1], [], []>} : vector<32x4xf32>, vector<4x288xf32>, vector<32x288xf32> -> vector<32x288xf32>
    %32 = arith.addf %27, %31 : vector<32x288xf32>
    %33 = vector.extract_strided_slice %1 {offsets = [0, 36], sizes = [4, 288], strides = [1, 1]} : vector<4x326xf32> to vector<4x288xf32>
    %c6 = arith.constant 6 : index
    %c0_21 = arith.constant 0 : index
    %c0_22 = arith.constant 0 : index
    %34 = vector.load %arg2[%c6, %c0_21, %c0_22] : memref<9x32x4xf32, #tpu.memory_space<vmem>>, vector<1x32x4xf32>
    %35 = vector.shape_cast %34 : vector<1x32x4xf32> to vector<32x4xf32>
    %cst_23 = arith.constant dense<0.000000e+00> : vector<32x288xf32>
    %36 = tpu.matmul %35, %33, %cst_23 {dimension_numbers = #tpu.dot_dimension_numbers<[1], [0], [0], [1], [0, 0, 1, 1], [], []>} : vector<32x4xf32>, vector<4x288xf32>, vector<32x288xf32> -> vector<32x288xf32>
    %37 = arith.addf %32, %36 : vector<32x288xf32>
    %38 = vector.extract_strided_slice %1 {offsets = [0, 37], sizes = [4, 288], strides = [1, 1]} : vector<4x326xf32> to vector<4x288xf32>
    %c7 = arith.constant 7 : index
    %c0_24 = arith.constant 0 : index
    %c0_25 = arith.constant 0 : index
    %39 = vector.load %arg2[%c7, %c0_24, %c0_25] : memref<9x32x4xf32, #tpu.memory_space<vmem>>, vector<1x32x4xf32>
    %40 = vector.shape_cast %39 : vector<1x32x4xf32> to vector<32x4xf32>
    %cst_26 = arith.constant dense<0.000000e+00> : vector<32x288xf32>
    %41 = tpu.matmul %40, %38, %cst_26 {dimension_numbers = #tpu.dot_dimension_numbers<[1], [0], [0], [1], [0, 0, 1, 1], [], []>} : vector<32x4xf32>, vector<4x288xf32>, vector<32x288xf32> -> vector<32x288xf32>
    %42 = arith.addf %37, %41 : vector<32x288xf32>
    %43 = vector.extract_strided_slice %1 {offsets = [0, 38], sizes = [4, 288], strides = [1, 1]} : vector<4x326xf32> to vector<4x288xf32>
    %c8 = arith.constant 8 : index
    %c0_27 = arith.constant 0 : index
    %c0_28 = arith.constant 0 : index
    %44 = vector.load %arg2[%c8, %c0_27, %c0_28] : memref<9x32x4xf32, #tpu.memory_space<vmem>>, vector<1x32x4xf32>
    %45 = vector.shape_cast %44 : vector<1x32x4xf32> to vector<32x4xf32>
    %cst_29 = arith.constant dense<0.000000e+00> : vector<32x288xf32>
    %46 = tpu.matmul %45, %43, %cst_29 {dimension_numbers = #tpu.dot_dimension_numbers<[1], [0], [0], [1], [0, 0, 1, 1], [], []>} : vector<32x4xf32>, vector<4x288xf32>, vector<32x288xf32> -> vector<32x288xf32>
    %47 = arith.addf %42, %46 : vector<32x288xf32>
    %c0_30 = arith.constant 0 : index
    %c0_31 = arith.constant 0 : index
    %48 = vector.load %arg3[%c0_30, %c0_31] : memref<1x32xf32, #tpu.memory_space<vmem>>, vector<1x32xf32>
    %49 = vector.shape_cast %48 : vector<1x32xf32> to vector<32xf32>
    %50 = vector.shape_cast %49 : vector<32xf32> to vector<32x1xf32>
    %51 = vector.broadcast %50 : vector<32x1xf32> to vector<32x288xf32>
    %52 = arith.addf %47, %51 : vector<32x288xf32>
    %c0_32 = arith.constant 0 : index
    %c0_33 = arith.constant 0 : index
    %c0_34 = arith.constant 0 : index
    %53 = vector.load %arg4[%c0_32, %c0_33, %c0_34] : memref<1x32x288xf32, #tpu.memory_space<vmem>>, vector<1x32x288xf32>
    %54 = vector.shape_cast %53 : vector<1x32x288xf32> to vector<32x288xf32>
    %55 = vector.shape_cast %52 : vector<32x288xf32> to vector<1x32x288xf32>
    tpu.vector_store %arg4[%c0_32, %c0_33, %c0_34], %55 {strides = array<i32>} : memref<1x32x288xf32, #tpu.memory_space<vmem>>, vector<1x32x288xf32>,
    return
  }
  func.func @transform_0(%arg0: i32) -> (i32, i32, i32) {
    %c0_i32 = arith.constant 0 : i32
    %c0_i32_0 = arith.constant 0 : i32
    %c0_i32_1 = arith.constant 0 : i32
    return %arg0, %c0_i32, %c0_i32_0 : i32, i32, i32
  }
  func.func @transform_1(%arg0: i32) -> (i32, i32, i32) {
    %c0_i32 = arith.constant 0 : i32
    %c0_i32_0 = arith.constant 0 : i32
    %c0_i32_1 = arith.constant 0 : i32
    %c0_i32_2 = arith.constant 0 : i32
    return %c0_i32, %c0_i32_0, %c0_i32_1 : i32, i32, i32
  }
  func.func @transform_2(%arg0: i32) -> (i32, i32) {
    %c0_i32 = arith.constant 0 : i32
    %c0_i32_0 = arith.constant 0 : i32
    %c0_i32_1 = arith.constant 0 : i32
    return %c0_i32, %c0_i32_0 : i32, i32
  }
  func.func @transform_3(%arg0: i32) -> (i32, i32, i32) {
    %c0_i32 = arith.constant 0 : i32
    %c0_i32_0 = arith.constant 0 : i32
    %c0_i32_1 = arith.constant 0 : i32
    return %arg0, %c0_i32, %c0_i32_0 : i32, i32, i32
  }
}

</mosaic_0001>

<llo_original>
// kernel: tpu_custom_call.1
$region0: #{tpu_custom_call.1}
  #allocation0 [shape = 'u32[]', space=smem, size = 0x4, offset = 0x4, fixed_abs, tag = 'smem constant byte address 0x4 - core index']
  #allocation1 [shape = 'u32[144,128]{1,0:T(1,128)}', space=vmem, size = 0x12000, scoped, tag = 'internal scratch']
  %s0 = inlined_call_operand.vmem [shape: f32[2,4,326], index: 0, kind: input, shape index: {}]
  %s1 = inlined_call_operand.vmem [shape: f32[9,32,4], index: 1, kind: input, shape index: {}]
  %s2 = inlined_call_operand.vmem [shape: f32[1,32], index: 2, kind: input, shape index: {}]
  %s3 = inlined_call_operand.hbm [shape: f32[2,32,288], index: 3, kind: output, shape index: {}]
  %s4 = sld [smem:[#allocation0]]
  $region45: #{tpu_custom_call.1} parent=0
    _
  %s6 = ssub.s32 1, %s4
  %s7 = scalar_select 0, %s6, %s4
  $region1: #{tpu_custom_call.1} parent=0
    #allocation2 [shape = 'u8[98304]{0}', space=vmem, size = 0x18000, scoped, tag = 'output window, operand 0']
    #allocation3 [shape = 's32[2]{0}', space=sflag, size = 0x8, scoped, tag = 'scoped memory for tpu_custom_call.1']
    %8 = vsyncpa [#allocation3], 0
    %s9 = scalar_lea.sflag [#allocation3], 1
    %10 = vsyncpa %s9, 0
    loop: start=0, step=1, limit=4
    $region2: #{tpu_custom_call.1} parent=1 // loop_pre_header
      _
    $region3: #{tpu_custom_call.1} parent=1 // loop_header
      %s12 = sphi 0, %s16
      %p13 = scmp.ge.s32.totalorder %s12, 4
      %s22 = sphi 0, %s24
      %s25 = sphi 0, %s22
      %s26 = sphi 0, %s25
      %s42 = sphi 0, %s26
      %s46 = sphi 0, %s46
      %s48 = sphi 0, %s46
      %s49 = sphi 0, %s48
      %s63 = sphi 0, %s49
      %s67 = sphi 0, %s67
      %s69 = sphi 0, %s67
      %s70 = sphi 0, %s69
      %s84 = sphi 0, %s70
      %s90 = sphi 0, %s92
      %s93 = sphi 0, %s90
      %s94 = sphi 0, %s93
      %s110 = sphi 0, %s94
    $region4: #{tpu_custom_call.1} parent=1 // loop_header_branch
      %15 = sbr.rel (%p13) target = $region8
    $region5: #{tpu_custom_call.1} parent=1 // loop_body
      %s17 = ssub.s32 %s12, 1
      %s18 = ssub.s32 %s12, 2
      %s19 = sadd.s32 %s12, 1
      %s20 = ssub.s32 %s12, %s19
      %p21 = scmp.eq.s32.totalorder %s20, 0
      %s23 = sadd.s32 %s22, 1
      %s24 = scalar_select %p21, %s22, %s23
      %p27 = pneg %p21
      %p28 = scmp.eq.s32.totalorder %s12, 1
      %p29 = por %p27, %p28
      %p30 = scmp.ne.s32.totalorder %s22, %s25
      %p31 = scmp.eq.s32.totalorder %s12, 0
      %p32 = por %p30, %p31
      %p33 = scmp.ne.s32.totalorder %s22, %s25
      %p34 = scmp.eq.s32.totalorder %s17, 1
      %p35 = por %p33, %p34
      %p36 = scmp.ne.s32.totalorder %s25, %s26
      %p37 = scmp.eq.s32.totalorder %s17, 0
      %p38 = por %p36, %p37
      %p39 = scmp.ne.s32.totalorder %s25, %s26
      %p40 = scmp.eq.s32.totalorder %s18, 1
      %p41 = por %p39, %p40
      %p43 = scmp.ne.s32.totalorder %s26, %s42
      %p44 = scmp.eq.s32.totalorder %s18, 0
      %p45 = por %p43, %p44
      %s47 = sadd.s32 %s46, 1
      %p50 = scmp.eq.s32.totalorder %s12, 1
      %p51 = scmp.ne.s32.totalorder %s46, %s48
      %p52 = scmp.eq.s32.totalorder %s12, 0
      %p53 = por %p51, %p52
      %p54 = scmp.ne.s32.totalorder %s46, %s48
      %p55 = scmp.eq.s32.totalorder %s17, 1
      %p56 = por %p54, %p55
      %p57 = scmp.ne.s32.totalorder %s48, %s49
      %p58 = scmp.eq.s32.totalorder %s17, 0
      %p59 = por %p57, %p58
      %p60 = scmp.ne.s32.totalorder %s48, %s49
      %p61 = scmp.eq.s32.totalorder %s18, 1
      %p62 = por %p60, %p61
      %p64 = scmp.ne.s32.totalorder %s49, %s63
      %p65 = scmp.eq.s32.totalorder %s18, 0
      %p66 = por %p64, %p65
      %s68 = sadd.s32 %s67, 1
      %p71 = scmp.eq.s32.totalorder %s12, 1
      %p72 = scmp.ne.s32.totalorder %s67, %s69
      %p73 = scmp.eq.s32.totalorder %s12, 0
      %p74 = por %p72, %p73
      %p75 = scmp.ne.s32.totalorder %s67, %s69
      %p76 = scmp.eq.s32.totalorder %s17, 1
      %p77 = por %p75, %p76
      %p78 = scmp.ne.s32.totalorder %s69, %s70
      %p79 = scmp.eq.s32.totalorder %s17, 0
      %p80 = por %p78, %p79
      %p81 = scmp.ne.s32.totalorder %s69, %s70
      %p82 = scmp.eq.s32.totalorder %s18, 1
      %p83 = por %p81, %p82
      %p85 = scmp.ne.s32.totalorder %s70, %s84
      %p86 = scmp.eq.s32.totalorder %s18, 0
      %p87 = por %p85, %p86
      %s88 = ssub.s32 %s12, %s19
      %p89 = scmp.eq.s32.totalorder %s88, 0
      %s91 = sadd.s32 %s90, 1
      %s92 = scalar_select %p89, %s90, %s91
      %p95 = pneg %p89
      %p96 = scmp.eq.s32.totalorder %s12, 1
      %p97 = por %p95, %p96
      %p98 = scmp.ne.s32.totalorder %s90, %s93
      %p99 = scmp.eq.s32.totalorder %s12, 0
      %p100 = por %p98, %p99
      %p101 = scmp.ne.s32.totalorder %s90, %s93
      %p102 = scmp.eq.s32.totalorder %s17, 1
      %p103 = por %p101, %p102
      %p104 = scmp.ne.s32.totalorder %s93, %s94
      %p105 = scmp.eq.s32.totalorder %s17, 0
      %p106 = por %p104, %p105
      %p107 = scmp.ne.s32.totalorder %s93, %s94
      %p108 = scmp.eq.s32.totalorder %s18, 1
      %p109 = por %p107, %p108
      %p111 = scmp.ne.s32.totalorder %s94, %s110
      %p112 = scmp.eq.s32.totalorder %s18, 0
      %p113 = por %p111, %p112
      %p114 = scmp.le.s32.totalorder 1, %s12
      %p115 = scmp.lt.s32.totalorder %s12, 3
      %p116 = pnand %p114, %p115
      %p117 = pneg %p116
      // Predicated region
      $region9: #{tpu_custom_call.1} parent=5 // pred_check
        _
      $region10: #{tpu_custom_call.1} parent=5 // pred_check_branch
        %119 = sbr.rel (%p116) target = $region12
      $region11: #{tpu_custom_call.1} parent=5 // pred_region
        %s120 = ssub.s32 %s12, 1
        // Predicated region
        $region13: #{tpu_custom_call.1} parent=11 // pred_check
          %p121 = pneg %p59
        $region14: #{tpu_custom_call.1} parent=11 // pred_check_branch
          %123 = sbr.rel (%p121) target = $region16
        $region15: #{tpu_custom_call.1} parent=11 // pred_region
          _
        $region16: #{tpu_custom_call.1} parent=11 // pred_fallthru
          _
        // Predicated region
        $region17: #{tpu_custom_call.1} parent=11 // pred_check
          %p124 = pneg %p80
        $region18: #{tpu_custom_call.1} parent=11 // pred_check_branch
          %126 = sbr.rel (%p124) target = $region20
        $region19: #{tpu_custom_call.1} parent=11 // pred_region
          _
        $region20: #{tpu_custom_call.1} parent=11 // pred_fallthru
          _
      $region12: #{tpu_custom_call.1} parent=5 // pred_fallthru
        _
      %p127 = scmp.lt.s32.totalorder %s12, 2
      // Predicated region
      $region21: #{tpu_custom_call.1} parent=5 // pred_check
        %p128 = pneg %p127
      $region22: #{tpu_custom_call.1} parent=5 // pred_check_branch
        %130 = sbr.rel (%p128) target = $region24
      $region23: #{tpu_custom_call.1} parent=5 // pred_region
        // Predicated region
        $region25: #{tpu_custom_call.1} parent=23 // pred_check
          %p131 = pneg %p32
        $region26: #{tpu_custom_call.1} parent=23 // pred_check_branch
          %133 = sbr.rel (%p131) target = $region28
        $region27: #{tpu_custom_call.1} parent=23 // pred_region
          %p134 = scmp.lt.s32.totalorder %s12, 1
          %s135 = scalar_select %p134, %s12, 1
          %s136 = smul.addr %s135, 3
          %s137 = smul.addr %s136, 4
          %s138 = scalar_lea.vmem %s0, %s137
        $region28: #{tpu_custom_call.1} parent=23 // pred_fallthru
          _
      $region24: #{tpu_custom_call.1} parent=5 // pred_fallthru
        _
      %p139 = scmp.le.s32.totalorder 1, %s12
      %p140 = scmp.lt.s32.totalorder %s12, 3
      %p141 = pnand %p139, %p140
      %p142 = pneg %p141
      // Predicated region
      $region29: #{tpu_custom_call.1} parent=5 // pred_check
        _
      $region30: #{tpu_custom_call.1} parent=5 // pred_check_branch
        %144 = sbr.rel (%p141) target = $region32
      $region31: #{tpu_custom_call.1} parent=5 // pred_region
        %s145 = ssub.s32 %s12, 1
        %p146 = scmp.lt.s32.totalorder %s17, 1
        %s147 = scalar_select %p146, %s17, 1
        %s148 = smul.addr %s147, 3
        %s149 = smul.addr %s148, 4
        %s150 = scalar_lea.vmem %s0, %s149
        %p151 = pneg %p38
        %p152 = pneg %p35
        %p153 = pneg %p59
        %p154 = pneg %p56
        %p155 = pneg %p80
        %p156 = pneg %p77
        %p157 = pneg %p106
        %p158 = pneg %p103
        %s159 = sand.u32 %s93, 1
        %s160 = scalar_lea.sflag [#allocation3], %s159
        %s161 = sand.u32 %s93, 1
        %s162 = smul.addr %s161, 96
        %s163 = scalar_lea.vmem [#allocation2], %s162
        %p164 = scmp.lt.s32.totalorder %s17, 1
        %s165 = scalar_select %p164, %s17, 1
        %s166 = smul.addr %s165, 3
        %s167 = smul.addr %s166, 4
        %s168 = scalar_lea.vmem %s0, %s167
        %v169 = vld [vmem:[%s168] sm:$0xff]
        %v170 = vld [vmem:[%s168 + $0x8] sm:$0xf]
        %v171 = vld [vmem:[%s1] sm:$0xff]
        %v172 = vld [vmem:[%s1 + $0x8] sm:$0xff]
        %v173 = vld [vmem:[%s1 + $0x10] sm:$0xff]
        %v174 = vld [vmem:[%s1 + $0x18] sm:$0xff]
        %s175 = scalar_lea.vmem %s1, 32
        %v176 = vld [vmem:[%s175] sm:$0xff]
        %v177 = vld [vmem:[%s175 + $0x8] sm:$0xff]
        %v178 = vld [vmem:[%s175 + $0x10] sm:$0xff]
        %v179 = vld [vmem:[%s175 + $0x18] sm:$0xff]
        %v182 = vcombine.high %v169, %v169
        %183 = vrot.lane.b32.xlu0 %v169, 127
        %v184 = vpop.permute.xlu0 %183
        %185 = vrot.lane.b32.xlu0 %v182, 127
        %v186 = vpop.permute.xlu0 %185
        %187 = vrot.lane.b32.xlu0 %v170, 127
        %v188 = vpop.permute.xlu0 %187
        %vm189 = vcmask 1039360
        %v190 = vsel %vm189, %v184, %v186
        %v191 = vsel %vm189, %v186, %v188
        %vm192 = vcmask 31744
        %v194 = vsel %vm192, %v176, 0
        %v197 = vsel %vm192, %v177, 0
        %v200 = vsel %vm192, %v178, 0
        %v203 = vsel %vm192, %v179, 0
        %vm205 = vcmask 1043456
        %v206 = vsel %vm205, %v190, 0
        %v208 = vsel %vm205, %v191, 0
        %v210 = vsel %vm205, %v188, 0
        %212 = vmatprep.subr.mxu0 %v208
        %213 = vmatpush1.msra.mxu0 %v206
        %214 = vmatprep.subr.mxu0 0.0
        %215 = vmatpush1.msra.mxu0 0.0
        %216 = vmatprep.subr.mxu0 0.0
        %217 = vmatpush1.msra.mxu0 0.0
        %218 = vmatprep.subr.mxu0 0.0
        %219 = vmatpush1.msra.mxu0 0.0
        %220 = vmatprep.subr.mxu0 0.0
        %221 = vmatpush1.msra.mxu0 0.0
        %222 = vmatprep.subr.mxu0 0.0
        %223 = vmatpush1.msra.mxu0 0.0
        %224 = vmatprep.subr.mxu0 0.0
        %225 = vmatpush1.msra.mxu0 0.0
        %226 = vmatprep.subr.mxu0 0.0
        %227 = vmatpush1.msra.mxu0 0.0
        %228 = vmatprep.subr.mxu0 0.0
        %229 = vmatpush1.msra.mxu0 0.0
        %230 = vmatprep.subr.mxu0 0.0
        %231 = vmatpush1.msra.mxu0 0.0
        %232 = vmatprep.subr.mxu0 0.0
        %233 = vmatpush1.msra.mxu0 0.0
        %234 = vmatprep.subr.mxu0 0.0
        %235 = vmatpush1.msra.mxu0 0.0
        %236 = vmatprep.subr.mxu0 0.0
        %237 = vmatpush1.msra.mxu0 0.0
        %238 = vmatprep.subr.mxu0 0.0
        %239 = vmatpush1.msra.mxu0 0.0
        %240 = vmatprep.subr.mxu0 0.0
        %241 = vmatpush1.msra.mxu0 0.0
        %242 = vmatprep.subr.mxu0 0.0
        %243 = vmatpush1.msra.mxu0 0.0
        %244 = vmatprep.subr.mxu0 0.0
        %245 = vmatpush1.msra.mxu0 0.0
        %246 = vmatprep.subr.mxu0 0.0
        %247 = vmatpush1.msra.mxu0 0.0
        %248 = vmatprep.subr.mxu0 0.0
        %249 = vmatpush1.msra.mxu0 0.0
        %250 = vmatprep.subr.mxu0 0.0
        %251 = vmatpush1.msra.mxu0 0.0
        %252 = vmatprep.subr.mxu0 0.0
        %253 = vmatpush1.msra.mxu0 0.0
        %254 = vmatprep.subr.mxu0 0.0
        %255 = vmatpush1.msra.mxu0 0.0
        %256 = vmatprep.subr.mxu0 0.0
        %257 = vmatpush1.msra.mxu0 0.0
        %258 = vmatprep.subr.mxu0 0.0
        %259 = vmatpush1.msra.mxu0 0.0
        %260 = vmatprep.subr.mxu0 0.0
        %261 = vmatpush1.msra.mxu0 0.0
        %262 = vmatprep.subr.mxu0 0.0
        %263 = vmatpush1.msra.mxu0 0.0
        %264 = vmatprep.subr.mxu0 0.0
        %265 = vmatpush1.msra.mxu0 0.0
        %266 = vmatprep.subr.mxu0 0.0
        %267 = vmatpush1.msra.mxu0 0.0
        %268 = vmatprep.subr.mxu0 0.0
        %269 = vmatpush1.msra.mxu0 0.0
        %270 = vmatprep.subr.mxu0 0.0
        %271 = vmatpush1.msra.mxu0 0.0
        %272 = vmatprep.subr.mxu0 0.0
        %273 = vmatpush1.msra.mxu0 0.0
        %274 = vmatprep.subr.mxu0 0.0
        %275 = vmatpush1.msra.mxu0 0.0
        %276 = vmatprep.mubr.f32.mxu0 0.0
        %277 = vmatmul.mubr.f32.gmra.mrb[0].mxu0 %v194
        %v278 = vpop.f32.mrb[0].mxu0
        %v279 = vadd.f32 0.0, %v278
        %v280 = vpop.f32.mrb[0].mxu0
        %v281 = vadd.f32 0.0, %v280
        %282 = vmatprep.mubr.f32.mxu0 0.0
        %283 = vmatmul.mubr.f32.gmra.mrb[0].mxu0 %v197
        %v284 = vpop.f32.mrb[0].mxu0
        %v285 = vadd.f32 0.0, %v284
        %v286 = vpop.f32.mrb[0].mxu0
        %v287 = vadd.f32 0.0, %v286
        %288 = vmatprep.mubr.f32.mxu0 0.0
        %289 = vmatmul.mubr.f32.gmra.mrb[0].mxu0 %v200
        %v290 = vpop.f32.mrb[0].mxu0
        %v291 = vadd.f32 0.0, %v290
        %v292 = vpop.f32.mrb[0].mxu0
        %v293 = vadd.f32 0.0, %v292
        %294 = vmatprep.mubr.f32.mxu0 0.0
        %295 = vmatmul.mubr.f32.gmra.mrb[0].mxu0 %v203
        %v296 = vpop.f32.mrb[0].mxu0
        %v297 = vadd.f32 0.0, %v296
        %v298 = vpop.f32.mrb[0].mxu0
        %v299 = vadd.f32 0.0, %v298
        %300 = vdwg.mxu0
        %301 = vmatprep.subr.mxu0 0.0
        %302 = vmatpush1.msra.mxu0 %v210
        %303 = vmatprep.subr.mxu0 0.0
        %304 = vmatpush1.msra.mxu0 0.0
        %305 = vmatprep.subr.mxu0 0.0
        %306 = vmatpush1.msra.mxu0 0.0
        %307 = vmatprep.subr.mxu0 0.0
        %308 = vmatpush1.msra.mxu0 0.0
        %309 = vmatprep.subr.mxu0 0.0
        %310 = vmatpush1.msra.mxu0 0.0
        %311 = vmatprep.subr.mxu0 0.0
        %312 = vmatpush1.msra.mxu0 0.0
        %313 = vmatprep.subr.mxu0 0.0
        %314 = vmatpush1.msra.mxu0 0.0
        %315 = vmatprep.subr.mxu0 0.0
        %316 = vmatpush1.msra.mxu0 0.0
        %317 = vmatprep.subr.mxu0 0.0
        %318 = vmatpush1.msra.mxu0 0.0
        %319 = vmatprep.subr.mxu0 0.0
        %320 = vmatpush1.msra.mxu0 0.0
        %321 = vmatprep.subr.mxu0 0.0
        %322 = vmatpush1.msra.mxu0 0.0
        %323 = vmatprep.subr.mxu0 0.0
        %324 = vmatpush1.msra.mxu0 0.0
        %325 = vmatprep.subr.mxu0 0.0
        %326 = vmatpush1.msra.mxu0 0.0
        %327 = vmatprep.subr.mxu0 0.0
        %328 = vmatpush1.msra.mxu0 0.0
        %329 = vmatprep.subr.mxu0 0.0
        %330 = vmatpush1.msra.mxu0 0.0
        %331 = vmatprep.subr.mxu0 0.0
        %332 = vmatpush1.msra.mxu0 0.0
        %333 = vmatprep.subr.mxu0 0.0
        %334 = vmatpush1.msra.mxu0 0.0
        %335 = vmatprep.subr.mxu0 0.0
        %336 = vmatpush1.msra.mxu0 0.0
        %337 = vmatprep.subr.mxu0 0.0
        %338 = vmatpush1.msra.mxu0 0.0
        %339 = vmatprep.subr.mxu0 0.0
        %340 = vmatpush1.msra.mxu0 0.0
        %341 = vmatprep.subr.mxu0 0.0
        %342 = vmatpush1.msra.mxu0 0.0
        %343 = vmatprep.subr.mxu0 0.0
        %344 = vmatpush1.msra.mxu0 0.0
        %345 = vmatprep.subr.mxu0 0.0
        %346 = vmatpush1.msra.mxu0 0.0
        %347 = vmatprep.subr.mxu0 0.0
        %348 = vmatpush1.msra.mxu0 0.0
        %349 = vmatprep.subr.mxu0 0.0
        %350 = vmatpush1.msra.mxu0 0.0
        %351 = vmatprep.subr.mxu0 0.0
        %352 = vmatpush1.msra.mxu0 0.0
        %353 = vmatprep.subr.mxu0 0.0
        %354 = vmatpush1.msra.mxu0 0.0
        %355 = vmatprep.subr.mxu0 0.0
        %356 = vmatpush1.msra.mxu0 0.0
        %357 = vmatprep.subr.mxu0 0.0
        %358 = vmatpush1.msra.mxu0 0.0
        %359 = vmatprep.subr.mxu0 0.0
        %360 = vmatpush1.msra.mxu0 0.0
        %361 = vmatprep.subr.mxu0 0.0
        %362 = vmatpush1.msra.mxu0 0.0
        %363 = vmatprep.subr.mxu0 0.0
        %364 = vmatpush1.msra.mxu0 0.0
        %365 = vmatprep.mubr.f32.mxu0 0.0
        %366 = vmatmul.mubr.f32.gmra.mrb[0].mxu0 %v194
        %v367 = vpop.f32.mrb[0].mxu0
        %v368 = vadd.f32 0.0, %v367
        %v369 = vpop.f32.mrb[0].mxu0
        %370 = vmatprep.mubr.f32.mxu0 0.0
        %371 = vmatmul.mubr.f32.gmra.mrb[0].mxu0 %v197
        %v372 = vpop.f32.mrb[0].mxu0
        %v373 = vadd.f32 0.0, %v372
        %v374 = vpop.f32.mrb[0].mxu0
        %375 = vmatprep.mubr.f32.mxu0 0.0
        %376 = vmatmul.mubr.f32.gmra.mrb[0].mxu0 %v200
        %v377 = vpop.f32.mrb[0].mxu0
        %v378 = vadd.f32 0.0, %v377
        %v379 = vpop.f32.mrb[0].mxu0
        %380 = vmatprep.mubr.f32.mxu0 0.0
        %381 = vmatmul.mubr.f32.gmra.mrb[0].mxu0 %v203
        %v382 = vpop.f32.mrb[0].mxu0
        %v383 = vadd.f32 0.0, %v382
        %v384 = vpop.f32.mrb[0].mxu0
        %385 = vdwg.mxu0
        %v387 = vsel %vm192, %v171, 0
        %v390 = vsel %vm192, %v172, 0
        %v393 = vsel %vm192, %v173, 0
        %v396 = vsel %vm192, %v174, 0
        %v398 = vsel %vm205, %v169, 0
        %v400 = vsel %vm205, %v182, 0
        %v402 = vsel %vm205, %v170, 0
        %404 = vmatprep.subr.mxu0 %v400
        %405 = vmatpush1.msra.mxu0 %v398
        %406 = vmatprep.subr.mxu0 0.0
        %407 = vmatpush1.msra.mxu0 0.0
        %408 = vmatprep.subr.mxu0 0.0
        %409 = vmatpush1.msra.mxu0 0.0
        %410 = vmatprep.subr.mxu0 0.0
        %411 = vmatpush1.msra.mxu0 0.0
        %412 = vmatprep.subr.mxu0 0.0
        %413 = vmatpush1.msra.mxu0 0.0
        %414 = vmatprep.subr.mxu0 0.0
        %415 = vmatpush1.msra.mxu0 0.0
        %416 = vmatprep.subr.mxu0 0.0
        %417 = vmatpush1.msra.mxu0 0.0
        %418 = vmatprep.subr.mxu0 0.0
        %419 = vmatpush1.msra.mxu0 0.0
        %420 = vmatprep.subr.mxu0 0.0
        %421 = vmatpush1.msra.mxu0 0.0
        %422 = vmatprep.subr.mxu0 0.0
        %423 = vmatpush1.msra.mxu0 0.0
        %424 = vmatprep.subr.mxu0 0.0
        %425 = vmatpush1.msra.mxu0 0.0
        %426 = vmatprep.subr.mxu0 0.0
        %427 = vmatpush1.msra.mxu0 0.0
        %428 = vmatprep.subr.mxu0 0.0
        %429 = vmatpush1.msra.mxu0 0.0
        %430 = vmatprep.subr.mxu0 0.0
        %431 = vmatpush1.msra.mxu0 0.0
        %432 = vmatprep.subr.mxu0 0.0
        %433 = vmatpush1.msra.mxu0 0.0
        %434 = vmatprep.subr.mxu0 0.0
        %435 = vmatpush1.msra.mxu0 0.0
        %436 = vmatprep.subr.mxu0 0.0
        %437 = vmatpush1.msra.mxu0 0.0
        %438 = vmatprep.subr.mxu0 0.0
        %439 = vmatpush1.msra.mxu0 0.0
        %440 = vmatprep.subr.mxu0 0.0
        %441 = vmatpush1.msra.mxu0 0.0
        %442 = vmatprep.subr.mxu0 0.0
        %443 = vmatpush1.msra.mxu0 0.0
        %444 = vmatprep.subr.mxu0 0.0
        %445 = vmatpush1.msra.mxu0 0.0
        %446 = vmatprep.subr.mxu0 0.0
        %447 = vmatpush1.msra.mxu0 0.0
        %448 = vmatprep.subr.mxu0 0.0
        %449 = vmatpush1.msra.mxu0 0.0
        %450 = vmatprep.subr.mxu0 0.0
        %451 = vmatpush1.msra.mxu0 0.0
        %452 = vmatprep.subr.mxu0 0.0
        %453 = vmatpush1.msra.mxu0 0.0
        %454 = vmatprep.subr.mxu0 0.0
        %455 = vmatpush1.msra.mxu0 0.0
        %456 = vmatprep.subr.mxu0 0.0
        %457 = vmatpush1.msra.mxu0 0.0
        %458 = vmatprep.subr.mxu0 0.0
        %459 = vmatpush1.msra.mxu0 0.0
        %460 = vmatprep.subr.mxu0 0.0
        %461 = vmatpush1.msra.mxu0 0.0
        %462 = vmatprep.subr.mxu0 0.0
        %463 = vmatpush1.msra.mxu0 0.0
        %464 = vmatprep.subr.mxu0 0.0
        %465 = vmatpush1.msra.mxu0 0.0
        %466 = vmatprep.subr.mxu0 0.0
        %467 = vmatpush1.msra.mxu0 0.0
        %468 = vmatprep.mubr.f32.mxu0 0.0
        %469 = vmatmul.mubr.f32.gmra.mrb[0].mxu0 %v387
        %v470 = vpop.f32.mrb[0].mxu0
        %v471 = vadd.f32 %v279, %v470
        %v472 = vpop.f32.mrb[0].mxu0
        %v473 = vadd.f32 %v281, %v472
        %474 = vmatprep.mubr.f32.mxu0 0.0
        %475 = vmatmul.mubr.f32.gmra.mrb[0].mxu0 %v390
        %v476 = vpop.f32.mrb[0].mxu0
        %v477 = vadd.f32 %v285, %v476
        %v478 = vpop.f32.mrb[0].mxu0
        %v479 = vadd.f32 %v287, %v478
        %480 = vmatprep.mubr.f32.mxu0 0.0
        %481 = vmatmul.mubr.f32.gmra.mrb[0].mxu0 %v393
        %v482 = vpop.f32.mrb[0].mxu0
        %v483 = vadd.f32 %v291, %v482
        %v484 = vpop.f32.mrb[0].mxu0
        %v485 = vadd.f32 %v293, %v484
        %486 = vmatprep.mubr.f32.mxu0 0.0
        %487 = vmatmul.mubr.f32.gmra.mrb[0].mxu0 %v396
        %v488 = vpop.f32.mrb[0].mxu0
        %v489 = vadd.f32 %v297, %v488
        %v490 = vpop.f32.mrb[0].mxu0
        %v491 = vadd.f32 %v299, %v490
        %492 = vdwg.mxu0
        %493 = vmatprep.subr.mxu0 0.0
        %494 = vmatpush1.msra.mxu0 %v402
        %495 = vmatprep.subr.mxu0 0.0
        %496 = vmatpush1.msra.mxu0 0.0
        %497 = vmatprep.subr.mxu0 0.0
        %498 = vmatpush1.msra.mxu0 0.0
        %499 = vmatprep.subr.mxu0 0.0
        %500 = vmatpush1.msra.mxu0 0.0
        %501 = vmatprep.subr.mxu0 0.0
        %502 = vmatpush1.msra.mxu0 0.0
        %503 = vmatprep.subr.mxu0 0.0
        %504 = vmatpush1.msra.mxu0 0.0
        %505 = vmatprep.subr.mxu0 0.0
        %506 = vmatpush1.msra.mxu0 0.0
        %507 = vmatprep.subr.mxu0 0.0
        %508 = vmatpush1.msra.mxu0 0.0
        %509 = vmatprep.subr.mxu0 0.0
        %510 = vmatpush1.msra.mxu0 0.0
        %511 = vmatprep.subr.mxu0 0.0
        %512 = vmatpush1.msra.mxu0 0.0
        %513 = vmatprep.subr.mxu0 0.0
        %514 = vmatpush1.msra.mxu0 0.0
        %515 = vmatprep.subr.mxu0 0.0
        %516 = vmatpush1.msra.mxu0 0.0
        %517 = vmatprep.subr.mxu0 0.0
        %518 = vmatpush1.msra.mxu0 0.0
        %519 = vmatprep.subr.mxu0 0.0
        %520 = vmatpush1.msra.mxu0 0.0
        %521 = vmatprep.subr.mxu0 0.0
        %522 = vmatpush1.msra.mxu0 0.0
        %523 = vmatprep.subr.mxu0 0.0
        %524 = vmatpush1.msra.mxu0 0.0
        %525 = vmatprep.subr.mxu0 0.0
        %526 = vmatpush1.msra.mxu0 0.0
        %527 = vmatprep.subr.mxu0 0.0
        %528 = vmatpush1.msra.mxu0 0.0
        %529 = vmatprep.subr.mxu0 0.0
        %530 = vmatpush1.msra.mxu0 0.0
        %531 = vmatprep.subr.mxu0 0.0
        %532 = vmatpush1.msra.mxu0 0.0
        %533 = vmatprep.subr.mxu0 0.0
        %534 = vmatpush1.msra.mxu0 0.0
        %535 = vmatprep.subr.mxu0 0.0
        %536 = vmatpush1.msra.mxu0 0.0
        %537 = vmatprep.subr.mxu0 0.0
        %538 = vmatpush1.msra.mxu0 0.0
        %539 = vmatprep.subr.mxu0 0.0
        %540 = vmatpush1.msra.mxu0 0.0
        %541 = vmatprep.subr.mxu0 0.0
        %542 = vmatpush1.msra.mxu0 0.0
        %543 = vmatprep.subr.mxu0 0.0
        %544 = vmatpush1.msra.mxu0 0.0
        %545 = vmatprep.subr.mxu0 0.0
        %546 = vmatpush1.msra.mxu0 0.0
        %547 = vmatprep.subr.mxu0 0.0
        %548 = vmatpush1.msra.mxu0 0.0
        %549 = vmatprep.subr.mxu0 0.0
        %550 = vmatpush1.msra.mxu0 0.0
        %551 = vmatprep.subr.mxu0 0.0
        %552 = vmatpush1.msra.mxu0 0.0
        %553 = vmatprep.subr.mxu0 0.0
        %554 = vmatpush1.msra.mxu0 0.0
        %555 = vmatprep.subr.mxu0 0.0
        %556 = vmatpush1.msra.mxu0 0.0
        %557 = vmatprep.mubr.f32.mxu0 0.0
        %558 = vmatmul.mubr.f32.gmra.mrb[0].mxu0 %v387
        %v559 = vpop.f32.mrb[0].mxu0
        %v560 = vadd.f32 %v368, %v559
        %v561 = vpop.f32.mrb[0].mxu0
        %562 = vmatprep.mubr.f32.mxu0 0.0
        %563 = vmatmul.mubr.f32.gmra.mrb[0].mxu0 %v390
        %v564 = vpop.f32.mrb[0].mxu0
        %v565 = vadd.f32 %v373, %v564
        %v566 = vpop.f32.mrb[0].mxu0
        %567 = vmatprep.mubr.f32.mxu0 0.0
        %568 = vmatmul.mubr.f32.gmra.mrb[0].mxu0 %v393
        %v569 = vpop.f32.mrb[0].mxu0
        %v570 = vadd.f32 %v378, %v569
        %v571 = vpop.f32.mrb[0].mxu0
        %572 = vmatprep.mubr.f32.mxu0 0.0
        %573 = vmatmul.mubr.f32.gmra.mrb[0].mxu0 %v396
        %v574 = vpop.f32.mrb[0].mxu0
        %v575 = vadd.f32 %v383, %v574
        %v576 = vpop.f32.mrb[0].mxu0
        %577 = vdwg.mxu0
        %s578 = scalar_lea.vmem %s1, 64
        %v579 = vld [vmem:[%s578] sm:$0xff]
        %v580 = vld [vmem:[%s578 + $0x8] sm:$0xff]
        %v581 = vld [vmem:[%s578 + $0x10] sm:$0xff]
        %v582 = vld [vmem:[%s578 + $0x18] sm:$0xff]
        %583 = vrot.lane.b32.xlu0 %v169, 126
        %v584 = vpop.permute.xlu0 %583
        %585 = vrot.lane.b32.xlu0 %v182, 126
        %v586 = vpop.permute.xlu0 %585
        %587 = vrot.lane.b32.xlu0 %v170, 126
        %v588 = vpop.permute.xlu0 %587
        %vm589 = vcmask 1031168
        %v590 = vsel %vm589, %v584, %v586
        %v591 = vsel %vm589, %v586, %v588
        %v593 = vsel %vm192, %v579, 0
        %v596 = vsel %vm192, %v580, 0
        %v599 = vsel %vm192, %v581, 0
        %v602 = vsel %vm192, %v582, 0
        %v604 = vsel %vm205, %v590, 0
        %v606 = vsel %vm205, %v591, 0
        %v608 = vsel %vm205, %v588, 0
        %610 = vmatprep.subr.mxu0 %v606
        %611 = vmatpush1.msra.mxu0 %v604
        %612 = vmatprep.subr.mxu0 0.0
        %613 = vmatpush1.msra.mxu0 0.0
        %614 = vmatprep.subr.mxu0 0.0
        %615 = vmatpush1.msra.mxu0 0.0
        %616 = vmatprep.subr.mxu0 0.0
        %617 = vmatpush1.msra.mxu0 0.0
        %618 = vmatprep.subr.mxu0 0.0
        %619 = vmatpush1.msra.mxu0 0.0
        %620 = vmatprep.subr.mxu0 0.0
        %621 = vmatpush1.msra.mxu0 0.0
        %622 = vmatprep.subr.mxu0 0.0
        %623 = vmatpush1.msra.mxu0 0.0
        %624 = vmatprep.subr.mxu0 0.0
        %625 = vmatpush1.msra.mxu0 0.0
        %626 = vmatprep.subr.mxu0 0.0
        %627 = vmatpush1.msra.mxu0 0.0
        %628 = vmatprep.subr.mxu0 0.0
        %629 = vmatpush1.msra.mxu0 0.0
        %630 = vmatprep.subr.mxu0 0.0
        %631 = vmatpush1.msra.mxu0 0.0
        %632 = vmatprep.subr.mxu0 0.0
        %633 = vmatpush1.msra.mxu0 0.0
        %634 = vmatprep.subr.mxu0 0.0
        %635 = vmatpush1.msra.mxu0 0.0
        %636 = vmatprep.subr.mxu0 0.0
        %637 = vmatpush1.msra.mxu0 0.0
        %638 = vmatprep.subr.mxu0 0.0
        %639 = vmatpush1.msra.mxu0 0.0
        %640 = vmatprep.subr.mxu0 0.0
        %641 = vmatpush1.msra.mxu0 0.0
        %642 = vmatprep.subr.mxu0 0.0
        %643 = vmatpush1.msra.mxu0 0.0
        %644 = vmatprep.subr.mxu0 0.0
        %645 = vmatpush1.msra.mxu0 0.0
        %646 = vmatprep.subr.mxu0 0.0
        %647 = vmatpush1.msra.mxu0 0.0
        %648 = vmatprep.subr.mxu0 0.0
        %649 = vmatpush1.msra.mxu0 0.0
        %650 = vmatprep.subr.mxu0 0.0
        %651 = vmatpush1.msra.mxu0 0.0
        %652 = vmatprep.subr.mxu0 0.0
        %653 = vmatpush1.msra.mxu0 0.0
        %654 = vmatprep.subr.mxu0 0.0
        %655 = vmatpush1.msra.mxu0 0.0
        %656 = vmatprep.subr.mxu0 0.0
        %657 = vmatpush1.msra.mxu0 0.0
        %658 = vmatprep.subr.mxu0 0.0
        %659 = vmatpush1.msra.mxu0 0.0
        %660 = vmatprep.subr.mxu0 0.0
        %661 = vmatpush1.msra.mxu0 0.0
        %662 = vmatprep.subr.mxu0 0.0
        %663 = vmatpush1.msra.mxu0 0.0
        %664 = vmatprep.subr.mxu0 0.0
        %665 = vmatpush1.msra.mxu0 0.0
        %666 = vmatprep.subr.mxu0 0.0
        %667 = vmatpush1.msra.mxu0 0.0
        %668 = vmatprep.subr.mxu0 0.0
        %669 = vmatpush1.msra.mxu0 0.0
        %670 = vmatprep.subr.mxu0 0.0
        %671 = vmatpush1.msra.mxu0 0.0
        %672 = vmatprep.subr.mxu0 0.0
        %673 = vmatpush1.msra.mxu0 0.0
        %674 = vmatprep.mubr.f32.mxu0 0.0
        %675 = vmatmul.mubr.f32.gmra.mrb[0].mxu0 %v593
        %v676 = vpop.f32.mrb[0].mxu0
        %v677 = vadd.f32 0.0, %v676
        %v678 = vpop.f32.mrb[0].mxu0
        %v679 = vadd.f32 0.0, %v678
        %680 = vmatprep.mubr.f32.mxu0 0.0
        %681 = vmatmul.mubr.f32.gmra.mrb[0].mxu0 %v596
        %v682 = vpop.f32.mrb[0].mxu0
        %v683 = vadd.f32 0.0, %v682
        %v684 = vpop.f32.mrb[0].mxu0
        %v685 = vadd.f32 0.0, %v684
        %686 = vmatprep.mubr.f32.mxu0 0.0
        %687 = vmatmul.mubr.f32.gmra.mrb[0].mxu0 %v599
        %v688 = vpop.f32.mrb[0].mxu0
        %v689 = vadd.f32 0.0, %v688
        %v690 = vpop.f32.mrb[0].mxu0
        %v691 = vadd.f32 0.0, %v690
        %692 = vmatprep.mubr.f32.mxu0 0.0
        %693 = vmatmul.mubr.f32.gmra.mrb[0].mxu0 %v602
        %v694 = vpop.f32.mrb[0].mxu0
        %v695 = vadd.f32 0.0, %v694
        %v696 = vpop.f32.mrb[0].mxu0
        %v697 = vadd.f32 0.0, %v696
        %698 = vdwg.mxu0
        %699 = vmatprep.subr.mxu0 0.0
        %700 = vmatpush1.msra.mxu0 %v608
        %701 = vmatprep.subr.mxu0 0.0
        %702 = vmatpush1.msra.mxu0 0.0
        %703 = vmatprep.subr.mxu0 0.0
        %704 = vmatpush1.msra.mxu0 0.0
        %705 = vmatprep.subr.mxu0 0.0
        %706 = vmatpush1.msra.mxu0 0.0
        %707 = vmatprep.subr.mxu0 0.0
        %708 = vmatpush1.msra.mxu0 0.0
        %709 = vmatprep.subr.mxu0 0.0
        %710 = vmatpush1.msra.mxu0 0.0
        %711 = vmatprep.subr.mxu0 0.0
        %712 = vmatpush1.msra.mxu0 0.0
        %713 = vmatprep.subr.mxu0 0.0
        %714 = vmatpush1.msra.mxu0 0.0
        %715 = vmatprep.subr.mxu0 0.0
        %716 = vmatpush1.msra.mxu0 0.0
        %717 = vmatprep.subr.mxu0 0.0
        %718 = vmatpush1.msra.mxu0 0.0
        %719 = vmatprep.subr.mxu0 0.0
        %720 = vmatpush1.msra.mxu0 0.0
        %721 = vmatprep.subr.mxu0 0.0
        %722 = vmatpush1.msra.mxu0 0.0
        %723 = vmatprep.subr.mxu0 0.0
        %724 = vmatpush1.msra.mxu0 0.0
        %725 = vmatprep.subr.mxu0 0.0
        %726 = vmatpush1.msra.mxu0 0.0
        %727 = vmatprep.subr.mxu0 0.0
        %728 = vmatpush1.msra.mxu0 0.0
        %729 = vmatprep.subr.mxu0 0.0
        %730 = vmatpush1.msra.mxu0 0.0
        %731 = vmatprep.subr.mxu0 0.0
        %732 = vmatpush1.msra.mxu0 0.0
        %733 = vmatprep.subr.mxu0 0.0
        %734 = vmatpush1.msra.mxu0 0.0
        %735 = vmatprep.subr.mxu0 0.0
        %736 = vmatpush1.msra.mxu0 0.0
        %737 = vmatprep.subr.mxu0 0.0
        %738 = vmatpush1.msra.mxu0 0.0
        %739 = vmatprep.subr.mxu0 0.0
        %740 = vmatpush1.msra.mxu0 0.0
        %741 = vmatprep.subr.mxu0 0.0
        %742 = vmatpush1.msra.mxu0 0.0
        %743 = vmatprep.subr.mxu0 0.0
        %744 = vmatpush1.msra.mxu0 0.0
        %745 = vmatprep.subr.mxu0 0.0
        %746 = vmatpush1.msra.mxu0 0.0
        %747 = vmatprep.subr.mxu0 0.0
        %748 = vmatpush1.msra.mxu0 0.0
        %749 = vmatprep.subr.mxu0 0.0
        %750 = vmatpush1.msra.mxu0 0.0
        %751 = vmatprep.subr.mxu0 0.0
        %752 = vmatpush1.msra.mxu0 0.0
        %753 = vmatprep.subr.mxu0 0.0
        %754 = vmatpush1.msra.mxu0 0.0
        %755 = vmatprep.subr.mxu0 0.0
        %756 = vmatpush1.msra.mxu0 0.0
        %757 = vmatprep.subr.mxu0 0.0
        %758 = vmatpush1.msra.mxu0 0.0
        %759 = vmatprep.subr.mxu0 0.0
        %760 = vmatpush1.msra.mxu0 0.0
        %761 = vmatprep.subr.mxu0 0.0
        %762 = vmatpush1.msra.mxu0 0.0
        %763 = vmatprep.mubr.f32.mxu0 0.0
        %764 = vmatmul.mubr.f32.gmra.mrb[0].mxu0 %v593
        %v765 = vpop.f32.mrb[0].mxu0
        %v766 = vadd.f32 0.0, %v765
        %v767 = vpop.f32.mrb[0].mxu0
        %768 = vmatprep.mubr.f32.mxu0 0.0
        %769 = vmatmul.mubr.f32.gmra.mrb[0].mxu0 %v596
        %v770 = vpop.f32.mrb[0].mxu0
        %v771 = vadd.f32 0.0, %v770
        %v772 = vpop.f32.mrb[0].mxu0
        %773 = vmatprep.mubr.f32.mxu0 0.0
        %774 = vmatmul.mubr.f32.gmra.mrb[0].mxu0 %v599
        %v775 = vpop.f32.mrb[0].mxu0
        %v776 = vadd.f32 0.0, %v775
        %v777 = vpop.f32.mrb[0].mxu0
        %778 = vmatprep.mubr.f32.mxu0 0.0
        %779 = vmatmul.mubr.f32.gmra.mrb[0].mxu0 %v602
        %v780 = vpop.f32.mrb[0].mxu0
        %v781 = vadd.f32 0.0, %v780
        %v782 = vpop.f32.mrb[0].mxu0
        %783 = vdwg.mxu0
        %v784 = vadd.f32 %v471, %v677
        %v785 = vadd.f32 %v473, %v679
        %v786 = vadd.f32 %v560, %v766
        %v787 = vadd.f32 %v477, %v683
        %v788 = vadd.f32 %v479, %v685
        %v789 = vadd.f32 %v565, %v771
        %v790 = vadd.f32 %v483, %v689
        %v791 = vadd.f32 %v485, %v691
        %v792 = vadd.f32 %v570, %v776
        %v793 = vadd.f32 %v489, %v695
        %v794 = vadd.f32 %v491, %v697
        %v795 = vadd.f32 %v575, %v781
        %s796 = scalar_lea.vmem %s1, 96
        %v797 = vld [vmem:[%s796] sm:$0xff]
        %v798 = vld [vmem:[%s796 + $0x8] sm:$0xff]
        %v799 = vld [vmem:[%s796 + $0x10] sm:$0xff]
        %v800 = vld [vmem:[%s796 + $0x18] sm:$0xff]
        %801 = vrot.lane.b32.xlu0 %v169, 110
        %v802 = vpop.permute.xlu0 %801
        %803 = vrot.lane.b32.xlu0 %v182, 110
        %v804 = vpop.permute.xlu0 %803
        %805 = vrot.lane.b32.xlu0 %v170, 110
        %v806 = vpop.permute.xlu0 %805
        %vm807 = vcmask 900096
        %v808 = vsel %vm807, %v802, %v804
        %v809 = vsel %vm807, %v804, %v806
        %v811 = vsel %vm192, %v797, 0
        %v814 = vsel %vm192, %v798, 0
        %v817 = vsel %vm192, %v799, 0
        %v820 = vsel %vm192, %v800, 0
        %v822 = vsel %vm205, %v808, 0
        %v824 = vsel %vm205, %v809, 0
        %v826 = vsel %vm205, %v806, 0
        %828 = vmatprep.subr.mxu0 %v824
        %829 = vmatpush1.msra.mxu0 %v822
        %830 = vmatprep.subr.mxu0 0.0
        %831 = vmatpush1.msra.mxu0 0.0
        %832 = vmatprep.subr.mxu0 0.0
        %833 = vmatpush1.msra.mxu0 0.0
        %834 = vmatprep.subr.mxu0 0.0
        %835 = vmatpush1.msra.mxu0 0.0
        %836 = vmatprep.subr.mxu0 0.0
        %837 = vmatpush1.msra.mxu0 0.0
        %838 = vmatprep.subr.mxu0 0.0
        %839 = vmatpush1.msra.mxu0 0.0
        %840 = vmatprep.subr.mxu0 0.0
        %841 = vmatpush1.msra.mxu0 0.0
        %842 = vmatprep.subr.mxu0 0.0
        %843 = vmatpush1.msra.mxu0 0.0
        %844 = vmatprep.subr.mxu0 0.0
        %845 = vmatpush1.msra.mxu0 0.0
        %846 = vmatprep.subr.mxu0 0.0
        %847 = vmatpush1.msra.mxu0 0.0
        %848 = vmatprep.subr.mxu0 0.0
        %849 = vmatpush1.msra.mxu0 0.0
        %850 = vmatprep.subr.mxu0 0.0
        %851 = vmatpush1.msra.mxu0 0.0
        %852 = vmatprep.subr.mxu0 0.0
        %853 = vmatpush1.msra.mxu0 0.0
        %854 = vmatprep.subr.mxu0 0.0
        %855 = vmatpush1.msra.mxu0 0.0
        %856 = vmatprep.subr.mxu0 0.0
        %857 = vmatpush1.msra.mxu0 0.0
        %858 = vmatprep.subr.mxu0 0.0
        %859 = vmatpush1.msra.mxu0 0.0
        %860 = vmatprep.subr.mxu0 0.0
        %861 = vmatpush1.msra.mxu0 0.0
        %862 = vmatprep.subr.mxu0 0.0
        %863 = vmatpush1.msra.mxu0 0.0
        %864 = vmatprep.subr.mxu0 0.0
        %865 = vmatpush1.msra.mxu0 0.0
        %866 = vmatprep.subr.mxu0 0.0
        %867 = vmatpush1.msra.mxu0 0.0
        %868 = vmatprep.subr.mxu0 0.0
        %869 = vmatpush1.msra.mxu0 0.0
        %870 = vmatprep.subr.mxu0 0.0
        %871 = vmatpush1.msra.mxu0 0.0
        %872 = vmatprep.subr.mxu0 0.0
        %873 = vmatpush1.msra.mxu0 0.0
        %874 = vmatprep.subr.mxu0 0.0
        %875 = vmatpush1.msra.mxu0 0.0
        %876 = vmatprep.subr.mxu0 0.0
        %877 = vmatpush1.msra.mxu0 0.0
        %878 = vmatprep.subr.mxu0 0.0
        %879 = vmatpush1.msra.mxu0 0.0
        %880 = vmatprep.subr.mxu0 0.0
        %881 = vmatpush1.msra.mxu0 0.0
        %882 = vmatprep.subr.mxu0 0.0
        %883 = vmatpush1.msra.mxu0 0.0
        %884 = vmatprep.subr.mxu0 0.0
        %885 = vmatpush1.msra.mxu0 0.0
        %886 = vmatprep.subr.mxu0 0.0
        %887 = vmatpush1.msra.mxu0 0.0
        %888 = vmatprep.subr.mxu0 0.0
        %889 = vmatpush1.msra.mxu0 0.0
        %890 = vmatprep.subr.mxu0 0.0
        %891 = vmatpush1.msra.mxu0 0.0
        %892 = vmatprep.mubr.f32.mxu0 0.0
        %893 = vmatmul.mubr.f32.gmra.mrb[0].mxu0 %v811
        %v894 = vpop.f32.mrb[0].mxu0
        %v895 = vadd.f32 0.0, %v894
        %v896 = vpop.f32.mrb[0].mxu0
        %v897 = vadd.f32 0.0, %v896
        %898 = vmatprep.mubr.f32.mxu0 0.0
        %899 = vmatmul.mubr.f32.gmra.mrb[0].mxu0 %v814
        %v900 = vpop.f32.mrb[0].mxu0
        %v901 = vadd.f32 0.0, %v900
        %v902 = vpop.f32.mrb[0].mxu0
        %v903 = vadd.f32 0.0, %v902
        %904 = vmatprep.mubr.f32.mxu0 0.0
        %905 = vmatmul.mubr.f32.gmra.mrb[0].mxu0 %v817
        %v906 = vpop.f32.mrb[0].mxu0
        %v907 = vadd.f32 0.0, %v906
        %v908 = vpop.f32.mrb[0].mxu0
        %v909 = vadd.f32 0.0, %v908
        %910 = vmatprep.mubr.f32.mxu0 0.0
        %911 = vmatmul.mubr.f32.gmra.mrb[0].mxu0 %v820
        %v912 = vpop.f32.mrb[0].mxu0
        %v913 = vadd.f32 0.0, %v912
        %v914 = vpop.f32.mrb[0].mxu0
        %v915 = vadd.f32 0.0, %v914
        %916 = vdwg.mxu0
        %917 = vmatprep.subr.mxu0 0.0
        %918 = vmatpush1.msra.mxu0 %v826
        %919 = vmatprep.subr.mxu0 0.0
        %920 = vmatpush1.msra.mxu0 0.0
        %921 = vmatprep.subr.mxu0 0.0
        %922 = vmatpush1.msra.mxu0 0.0
        %923 = vmatprep.subr.mxu0 0.0
        %924 = vmatpush1.msra.mxu0 0.0
        %925 = vmatprep.subr.mxu0 0.0
        %926 = vmatpush1.msra.mxu0 0.0
        %927 = vmatprep.subr.mxu0 0.0
        %928 = vmatpush1.msra.mxu0 0.0
        %929 = vmatprep.subr.mxu0 0.0
        %930 = vmatpush1.msra.mxu0 0.0
        %931 = vmatprep.subr.mxu0 0.0
        %932 = vmatpush1.msra.mxu0 0.0
        %933 = vmatprep.subr.mxu0 0.0
        %934 = vmatpush1.msra.mxu0 0.0
        %935 = vmatprep.subr.mxu0 0.0
        %936 = vmatpush1.msra.mxu0 0.0
        %937 = vmatprep.subr.mxu0 0.0
        %938 = vmatpush1.msra.mxu0 0.0
        %939 = vmatprep.subr.mxu0 0.0
        %940 = vmatpush1.msra.mxu0 0.0
        %941 = vmatprep.subr.mxu0 0.0
        %942 = vmatpush1.msra.mxu0 0.0
        %943 = vmatprep.subr.mxu0 0.0
        %944 = vmatpush1.msra.mxu0 0.0
        %945 = vmatprep.subr.mxu0 0.0
        %946 = vmatpush1.msra.mxu0 0.0
        %947 = vmatprep.subr.mxu0 0.0
        %948 = vmatpush1.msra.mxu0 0.0
        %949 = vmatprep.subr.mxu0 0.0
        %950 = vmatpush1.msra.mxu0 0.0
        %951 = vmatprep.subr.mxu0 0.0
        %952 = vmatpush1.msra.mxu0 0.0
        %953 = vmatprep.subr.mxu0 0.0
        %954 = vmatpush1.msra.mxu0 0.0
        %955 = vmatprep.subr.mxu0 0.0
        %956 = vmatpush1.msra.mxu0 0.0
        %957 = vmatprep.subr.mxu0 0.0
        %958 = vmatpush1.msra.mxu0 0.0
        %959 = vmatprep.subr.mxu0 0.0
        %960 = vmatpush1.msra.mxu0 0.0
        %961 = vmatprep.subr.mxu0 0.0
        %962 = vmatpush1.msra.mxu0 0.0
        %963 = vmatprep.subr.mxu0 0.0
        %964 = vmatpush1.msra.mxu0 0.0
        %965 = vmatprep.subr.mxu0 0.0
        %966 = vmatpush1.msra.mxu0 0.0
        %967 = vmatprep.subr.mxu0 0.0
        %968 = vmatpush1.msra.mxu0 0.0
        %969 = vmatprep.subr.mxu0 0.0
        %970 = vmatpush1.msra.mxu0 0.0
        %971 = vmatprep.subr.mxu0 0.0
        %972 = vmatpush1.msra.mxu0 0.0
        %973 = vmatprep.subr.mxu0 0.0
        %974 = vmatpush1.msra.mxu0 0.0
        %975 = vmatprep.subr.mxu0 0.0
        %976 = vmatpush1.msra.mxu0 0.0
        %977 = vmatprep.subr.mxu0 0.0
        %978 = vmatpush1.msra.mxu0 0.0
        %979 = vmatprep.subr.mxu0 0.0
        %980 = vmatpush1.msra.mxu0 0.0
        %981 = vmatprep.mubr.f32.mxu0 0.0
        %982 = vmatmul.mubr.f32.gmra.mrb[0].mxu0 %v811
        %v983 = vpop.f32.mrb[0].mxu0
        %v984 = vadd.f32 0.0, %v983
        %v985 = vpop.f32.mrb[0].mxu0
        %986 = vmatprep.mubr.f32.mxu0 0.0
        %987 = vmatmul.mubr.f32.gmra.mrb[0].mxu0 %v814
        %v988 = vpop.f32.mrb[0].mxu0
        %v989 = vadd.f32 0.0, %v988
        %v990 = vpop.f32.mrb[0].mxu0
        %991 = vmatprep.mubr.f32.mxu0 0.0
        %992 = vmatmul.mubr.f32.gmra.mrb[0].mxu0 %v817
        %v993 = vpop.f32.mrb[0].mxu0
        %v994 = vadd.f32 0.0, %v993
        %v995 = vpop.f32.mrb[0].mxu0
        %996 = vmatprep.mubr.f32.mxu0 0.0
        %997 = vmatmul.mubr.f32.gmra.mrb[0].mxu0 %v820
        %v998 = vpop.f32.mrb[0].mxu0
        %v999 = vadd.f32 0.0, %v998
        %v1000 = vpop.f32.mrb[0].mxu0
        %1001 = vdwg.mxu0
        %v1002 = vadd.f32 %v784, %v895
        %v1003 = vadd.f32 %v785, %v897
        %v1004 = vadd.f32 %v786, %v984
        %v1005 = vadd.f32 %v787, %v901
        %v1006 = vadd.f32 %v788, %v903
        %v1007 = vadd.f32 %v789, %v989
        %v1008 = vadd.f32 %v790, %v907
        %v1009 = vadd.f32 %v791, %v909
        %v1010 = vadd.f32 %v792, %v994
        %v1011 = vadd.f32 %v793, %v913
        %v1012 = vadd.f32 %v794, %v915
        %v1013 = vadd.f32 %v795, %v999
        %s1014 = scalar_lea.vmem %s1, 128
        %v1015 = vld [vmem:[%s1014] sm:$0xff]
        %v1016 = vld [vmem:[%s1014 + $0x8] sm:$0xff]
        %v1017 = vld [vmem:[%s1014 + $0x10] sm:$0xff]
        %v1018 = vld [vmem:[%s1014 + $0x18] sm:$0xff]
        %1019 = vrot.lane.b32.xlu0 %v169, 109
        %v1020 = vpop.permute.xlu0 %1019
        %1021 = vrot.lane.b32.xlu0 %v182, 109
        %v1022 = vpop.permute.xlu0 %1021
        %1023 = vrot.lane.b32.xlu0 %v170, 109
        %v1024 = vpop.permute.xlu0 %1023
        %vm1025 = vcmask 891904
        %v1026 = vsel %vm1025, %v1020, %v1022
        %v1027 = vsel %vm1025, %v1022, %v1024
        %v1029 = vsel %vm192, %v1015, 0
        %v1032 = vsel %vm192, %v1016, 0
        %v1035 = vsel %vm192, %v1017, 0
        %v1038 = vsel %vm192, %v1018, 0
        %v1040 = vsel %vm205, %v1026, 0
        %v1042 = vsel %vm205, %v1027, 0
        %v1044 = vsel %vm205, %v1024, 0
        %1046 = vmatprep.subr.mxu0 %v1042
        %1047 = vmatpush1.msra.mxu0 %v1040
        %1048 = vmatprep.subr.mxu0 0.0
        %1049 = vmatpush1.msra.mxu0 0.0
        %1050 = vmatprep.subr.mxu0 0.0
        %1051 = vmatpush1.msra.mxu0 0.0
        %1052 = vmatprep.subr.mxu0 0.0
        %1053 = vmatpush1.msra.mxu0 0.0
        %1054 = vmatprep.subr.mxu0 0.0
        %1055 = vmatpush1.msra.mxu0 0.0
        %1056 = vmatprep.subr.mxu0 0.0
        %1057 = vmatpush1.msra.mxu0 0.0
        %1058 = vmatprep.subr.mxu0 0.0
        %1059 = vmatpush1.msra.mxu0 0.0
        %1060 = vmatprep.subr.mxu0 0.0
        %1061 = vmatpush1.msra.mxu0 0.0
        %1062 = vmatprep.subr.mxu0 0.0
        %1063 = vmatpush1.msra.mxu0 0.0
        %1064 = vmatprep.subr.mxu0 0.0
        %1065 = vmatpush1.msra.mxu0 0.0
        %1066 = vmatprep.subr.mxu0 0.0
        %1067 = vmatpush1.msra.mxu0 0.0
        %1068 = vmatprep.subr.mxu0 0.0
        %1069 = vmatpush1.msra.mxu0 0.0
        %1070 = vmatprep.subr.mxu0 0.0
        %1071 = vmatpush1.msra.mxu0 0.0
        %1072 = vmatprep.subr.mxu0 0.0
        %1073 = vmatpush1.msra.mxu0 0.0
        %1074 = vmatprep.subr.mxu0 0.0
        %1075 = vmatpush1.msra.mxu0 0.0
        %1076 = vmatprep.subr.mxu0 0.0
        %1077 = vmatpush1.msra.mxu0 0.0
        %1078 = vmatprep.subr.mxu0 0.0
        %1079 = vmatpush1.msra.mxu0 0.0
        %1080 = vmatprep.subr.mxu0 0.0
        %1081 = vmatpush1.msra.mxu0 0.0
        %1082 = vmatprep.subr.mxu0 0.0
        %1083 = vmatpush1.msra.mxu0 0.0
        %1084 = vmatprep.subr.mxu0 0.0
        %1085 = vmatpush1.msra.mxu0 0.0
        %1086 = vmatprep.subr.mxu0 0.0
        %1087 = vmatpush1.msra.mxu0 0.0
        %1088 = vmatprep.subr.mxu0 0.0
        %1089 = vmatpush1.msra.mxu0 0.0
        %1090 = vmatprep.subr.mxu0 0.0
        %1091 = vmatpush1.msra.mxu0 0.0
        %1092 = vmatprep.subr.mxu0 0.0
        %1093 = vmatpush1.msra.mxu0 0.0
        %1094 = vmatprep.subr.mxu0 0.0
        %1095 = vmatpush1.msra.mxu0 0.0
        %1096 = vmatprep.subr.mxu0 0.0
        %1097 = vmatpush1.msra.mxu0 0.0
        %1098 = vmatprep.subr.mxu0 0.0
        %1099 = vmatpush1.msra.mxu0 0.0
        %1100 = vmatprep.subr.mxu0 0.0
        %1101 = vmatpush1.msra.mxu0 0.0
        %1102 = vmatprep.subr.mxu0 0.0
        %1103 = vmatpush1.msra.mxu0 0.0
        %1104 = vmatprep.subr.mxu0 0.0
        %1105 = vmatpush1.msra.mxu0 0.0
        %1106 = vmatprep.subr.mxu0 0.0
        %1107 = vmatpush1.msra.mxu0 0.0
        %1108 = vmatprep.subr.mxu0 0.0
        %1109 = vmatpush1.msra.mxu0 0.0
        %1110 = vmatprep.mubr.f32.mxu0 0.0
        %1111 = vmatmul.mubr.f32.gmra.mrb[0].mxu0 %v1029
        %v1112 = vpop.f32.mrb[0].mxu0
        %v1113 = vadd.f32 0.0, %v1112
        %v1114 = vpop.f32.mrb[0].mxu0
        %v1115 = vadd.f32 0.0, %v1114
        %1116 = vmatprep.mubr.f32.mxu0 0.0
        %1117 = vmatmul.mubr.f32.gmra.mrb[0].mxu0 %v1032
        %v1118 = vpop.f32.mrb[0].mxu0
        %v1119 = vadd.f32 0.0, %v1118
        %v1120 = vpop.f32.mrb[0].mxu0
        %v1121 = vadd.f32 0.0, %v1120
        %1122 = vmatprep.mubr.f32.mxu0 0.0
        %1123 = vmatmul.mubr.f32.gmra.mrb[0].mxu0 %v1035
        %v1124 = vpop.f32.mrb[0].mxu0
        %v1125 = vadd.f32 0.0, %v1124
        %v1126 = vpop.f32.mrb[0].mxu0
        %v1127 = vadd.f32 0.0, %v1126
        %1128 = vmatprep.mubr.f32.mxu0 0.0
        %1129 = vmatmul.mubr.f32.gmra.mrb[0].mxu0 %v1038
        %v1130 = vpop.f32.mrb[0].mxu0
        %v1131 = vadd.f32 0.0, %v1130
        %v1132 = vpop.f32.mrb[0].mxu0
        %v1133 = vadd.f32 0.0, %v1132
        %1134 = vdwg.mxu0
        %1135 = vmatprep.subr.mxu0 0.0
        %1136 = vmatpush1.msra.mxu0 %v1044
        %1137 = vmatprep.subr.mxu0 0.0
        %1138 = vmatpush1.msra.mxu0 0.0
        %1139 = vmatprep.subr.mxu0 0.0
        %1140 = vmatpush1.msra.mxu0 0.0
        %1141 = vmatprep.subr.mxu0 0.0
        %1142 = vmatpush1.msra.mxu0 0.0
        %1143 = vmatprep.subr.mxu0 0.0
        %1144 = vmatpush1.msra.mxu0 0.0
        %1145 = vmatprep.subr.mxu0 0.0
        %1146 = vmatpush1.msra.mxu0 0.0
        %1147 = vmatprep.subr.mxu0 0.0
        %1148 = vmatpush1.msra.mxu0 0.0
        %1149 = vmatprep.subr.mxu0 0.0
        %1150 = vmatpush1.msra.mxu0 0.0
        %1151 = vmatprep.subr.mxu0 0.0
        %1152 = vmatpush1.msra.mxu0 0.0
        %1153 = vmatprep.subr.mxu0 0.0
        %1154 = vmatpush1.msra.mxu0 0.0
        %1155 = vmatprep.subr.mxu0 0.0
        %1156 = vmatpush1.msra.mxu0 0.0
        %1157 = vmatprep.subr.mxu0 0.0
        %1158 = vmatpush1.msra.mxu0 0.0
        %1159 = vmatprep.subr.mxu0 0.0
        %1160 = vmatpush1.msra.mxu0 0.0
        %1161 = vmatprep.subr.mxu0 0.0
        %1162 = vmatpush1.msra.mxu0 0.0
        %1163 = vmatprep.subr.mxu0 0.0
        %1164 = vmatpush1.msra.mxu0 0.0
        %1165 = vmatprep.subr.mxu0 0.0
        %1166 = vmatpush1.msra.mxu0 0.0
        %1167 = vmatprep.subr.mxu0 0.0
        %1168 = vmatpush1.msra.mxu0 0.0
        %1169 = vmatprep.subr.mxu0 0.0
        %1170 = vmatpush1.msra.mxu0 0.0
        %1171 = vmatprep.subr.mxu0 0.0
        %1172 = vmatpush1.msra.mxu0 0.0
        %1173 = vmatprep.subr.mxu0 0.0
        %1174 = vmatpush1.msra.mxu0 0.0
        %1175 = vmatprep.subr.mxu0 0.0
        %1176 = vmatpush1.msra.mxu0 0.0
        %1177 = vmatprep.subr.mxu0 0.0
        %1178 = vmatpush1.msra.mxu0 0.0
        %1179 = vmatprep.subr.mxu0 0.0
        %1180 = vmatpush1.msra.mxu0 0.0
        %1181 = vmatprep.subr.mxu0 0.0
        %1182 = vmatpush1.msra.mxu0 0.0
        %1183 = vmatprep.subr.mxu0 0.0
        %1184 = vmatpush1.msra.mxu0 0.0
        %1185 = vmatprep.subr.mxu0 0.0
        %1186 = vmatpush1.msra.mxu0 0.0
        %1187 = vmatprep.subr.mxu0 0.0
        %1188 = vmatpush1.msra.mxu0 0.0
        %1189 = vmatprep.subr.mxu0 0.0
        %1190 = vmatpush1.msra.mxu0 0.0
        %1191 = vmatprep.subr.mxu0 0.0
        %1192 = vmatpush1.msra.mxu0 0.0
        %1193 = vmatprep.subr.mxu0 0.0
        %1194 = vmatpush1.msra.mxu0 0.0
        %1195 = vmatprep.subr.mxu0 0.0
        %1196 = vmatpush1.msra.mxu0 0.0
        %1197 = vmatprep.subr.mxu0 0.0
        %1198 = vmatpush1.msra.mxu0 0.0
        %1199 = vmatprep.mubr.f32.mxu0 0.0
        %1200 = vmatmul.mubr.f32.gmra.mrb[0].mxu0 %v1029
        %v1201 = vpop.f32.mrb[0].mxu0
        %v1202 = vadd.f32 0.0, %v1201
        %v1203 = vpop.f32.mrb[0].mxu0
        %1204 = vmatprep.mubr.f32.mxu0 0.0
        %1205 = vmatmul.mubr.f32.gmra.mrb[0].mxu0 %v1032
        %v1206 = vpop.f32.mrb[0].mxu0
        %v1207 = vadd.f32 0.0, %v1206
        %v1208 = vpop.f32.mrb[0].mxu0
        %1209 = vmatprep.mubr.f32.mxu0 0.0
        %1210 = vmatmul.mubr.f32.gmra.mrb[0].mxu0 %v1035
        %v1211 = vpop.f32.mrb[0].mxu0
        %v1212 = vadd.f32 0.0, %v1211
        %v1213 = vpop.f32.mrb[0].mxu0
        %1214 = vmatprep.mubr.f32.mxu0 0.0
        %1215 = vmatmul.mubr.f32.gmra.mrb[0].mxu0 %v1038
        %v1216 = vpop.f32.mrb[0].mxu0
        %v1217 = vadd.f32 0.0, %v1216
        %v1218 = vpop.f32.mrb[0].mxu0
        %1219 = vdwg.mxu0
        %v1220 = vadd.f32 %v1002, %v1113
        %v1221 = vadd.f32 %v1003, %v1115
        %v1222 = vadd.f32 %v1004, %v1202
        %v1223 = vadd.f32 %v1005, %v1119
        %v1224 = vadd.f32 %v1006, %v1121
        %v1225 = vadd.f32 %v1007, %v1207
        %v1226 = vadd.f32 %v1008, %v1125
        %v1227 = vadd.f32 %v1009, %v1127
        %v1228 = vadd.f32 %v1010, %v1212
        %v1229 = vadd.f32 %v1011, %v1131
        %v1230 = vadd.f32 %v1012, %v1133
        %v1231 = vadd.f32 %v1013, %v1217
        %s1232 = scalar_lea.vmem %s1, 160
        %v1233 = vld [vmem:[%s1232] sm:$0xff]
        %v1234 = vld [vmem:[%s1232 + $0x8] sm:$0xff]
        %v1235 = vld [vmem:[%s1232 + $0x10] sm:$0xff]
        %v1236 = vld [vmem:[%s1232 + $0x18] sm:$0xff]
        %1237 = vrot.lane.b32.xlu0 %v169, 108
        %v1238 = vpop.permute.xlu0 %1237
        %1239 = vrot.lane.b32.xlu0 %v182, 108
        %v1240 = vpop.permute.xlu0 %1239
        %1241 = vrot.lane.b32.xlu0 %v170, 108
        %v1242 = vpop.permute.xlu0 %1241
        %vm1243 = vcmask 883712
        %v1244 = vsel %vm1243, %v1238, %v1240
        %v1245 = vsel %vm1243, %v1240, %v1242
        %v1247 = vsel %vm192, %v1233, 0
        %v1250 = vsel %vm192, %v1234, 0
        %v1253 = vsel %vm192, %v1235, 0
        %v1256 = vsel %vm192, %v1236, 0
        %v1258 = vsel %vm205, %v1244, 0
        %v1260 = vsel %vm205, %v1245, 0
        %v1262 = vsel %vm205, %v1242, 0
        %1264 = vmatprep.subr.mxu0 %v1260
        %1265 = vmatpush1.msra.mxu0 %v1258
        %1266 = vmatprep.subr.mxu0 0.0
        %1267 = vmatpush1.msra.mxu0 0.0
        %1268 = vmatprep.subr.mxu0 0.0
        %1269 = vmatpush1.msra.mxu0 0.0
        %1270 = vmatprep.subr.mxu0 0.0
        %1271 = vmatpush1.msra.mxu0 0.0
        %1272 = vmatprep.subr.mxu0 0.0
        %1273 = vmatpush1.msra.mxu0 0.0
        %1274 = vmatprep.subr.mxu0 0.0
        %1275 = vmatpush1.msra.mxu0 0.0
        %1276 = vmatprep.subr.mxu0 0.0
        %1277 = vmatpush1.msra.mxu0 0.0
        %1278 = vmatprep.subr.mxu0 0.0
        %1279 = vmatpush1.msra.mxu0 0.0
        %1280 = vmatprep.subr.mxu0 0.0
        %1281 = vmatpush1.msra.mxu0 0.0
        %1282 = vmatprep.subr.mxu0 0.0
        %1283 = vmatpush1.msra.mxu0 0.0
        %1284 = vmatprep.subr.mxu0 0.0
        %1285 = vmatpush1.msra.mxu0 0.0
        %1286 = vmatprep.subr.mxu0 0.0
        %1287 = vmatpush1.msra.mxu0 0.0
        %1288 = vmatprep.subr.mxu0 0.0
        %1289 = vmatpush1.msra.mxu0 0.0
        %1290 = vmatprep.subr.mxu0 0.0
        %1291 = vmatpush1.msra.mxu0 0.0
        %1292 = vmatprep.subr.mxu0 0.0
        %1293 = vmatpush1.msra.mxu0 0.0
        %1294 = vmatprep.subr.mxu0 0.0
        %1295 = vmatpush1.msra.mxu0 0.0
        %1296 = vmatprep.subr.mxu0 0.0
        %1297 = vmatpush1.msra.mxu0 0.0
        %1298 = vmatprep.subr.mxu0 0.0
        %1299 = vmatpush1.msra.mxu0 0.0
        %1300 = vmatprep.subr.mxu0 0.0
        %1301 = vmatpush1.msra.mxu0 0.0
        %1302 = vmatprep.subr.mxu0 0.0
        %1303 = vmatpush1.msra.mxu0 0.0
        %1304 = vmatprep.subr.mxu0 0.0
        %1305 = vmatpush1.msra.mxu0 0.0
        %1306 = vmatprep.subr.mxu0 0.0
        %1307 = vmatpush1.msra.mxu0 0.0
        %1308 = vmatprep.subr.mxu0 0.0
        %1309 = vmatpush1.msra.mxu0 0.0
        %1310 = vmatprep.subr.mxu0 0.0
        %1311 = vmatpush1.msra.mxu0 0.0
        %1312 = vmatprep.subr.mxu0 0.0
        %1313 = vmatpush1.msra.mxu0 0.0
        %1314 = vmatprep.subr.mxu0 0.0
        %1315 = vmatpush1.msra.mxu0 0.0
        %1316 = vmatprep.subr.mxu0 0.0
        %1317 = vmatpush1.msra.mxu0 0.0
        %1318 = vmatprep.subr.mxu0 0.0
        %1319 = vmatpush1.msra.mxu0 0.0
        %1320 = vmatprep.subr.mxu0 0.0
        %1321 = vmatpush1.msra.mxu0 0.0
        %1322 = vmatprep.subr.mxu0 0.0
        %1323 = vmatpush1.msra.mxu0 0.0
        %1324 = vmatprep.subr.mxu0 0.0
        %1325 = vmatpush1.msra.mxu0 0.0
        %1326 = vmatprep.subr.mxu0 0.0
        %1327 = vmatpush1.msra.mxu0 0.0
        %1328 = vmatprep.mubr.f32.mxu0 0.0
        %1329 = vmatmul.mubr.f32.gmra.mrb[0].mxu0 %v1247
        %v1330 = vpop.f32.mrb[0].mxu0
        %v1331 = vadd.f32 0.0, %v1330
        %v1332 = vpop.f32.mrb[0].mxu0
        %v1333 = vadd.f32 0.0, %v1332
        %1334 = vmatprep.mubr.f32.mxu0 0.0
        %1335 = vmatmul.mubr.f32.gmra.mrb[0].mxu0 %v1250
        %v1336 = vpop.f32.mrb[0].mxu0
        %v1337 = vadd.f32 0.0, %v1336
        %v1338 = vpop.f32.mrb[0].mxu0
        %v1339 = vadd.f32 0.0, %v1338
        %1340 = vmatprep.mubr.f32.mxu0 0.0
        %1341 = vmatmul.mubr.f32.gmra.mrb[0].mxu0 %v1253
        %v1342 = vpop.f32.mrb[0].mxu0
        %v1343 = vadd.f32 0.0, %v1342
        %v1344 = vpop.f32.mrb[0].mxu0
        %v1345 = vadd.f32 0.0, %v1344
        %1346 = vmatprep.mubr.f32.mxu0 0.0
        %1347 = vmatmul.mubr.f32.gmra.mrb[0].mxu0 %v1256
        %v1348 = vpop.f32.mrb[0].mxu0
        %v1349 = vadd.f32 0.0, %v1348
        %v1350 = vpop.f32.mrb[0].mxu0
        %v1351 = vadd.f32 0.0, %v1350
        %1352 = vdwg.mxu0
        %1353 = vmatprep.subr.mxu0 0.0
        %1354 = vmatpush1.msra.mxu0 %v1262
        %1355 = vmatprep.subr.mxu0 0.0
        %1356 = vmatpush1.msra.mxu0 0.0
        %1357 = vmatprep.subr.mxu0 0.0
        %1358 = vmatpush1.msra.mxu0 0.0
        %1359 = vmatprep.subr.mxu0 0.0
        %1360 = vmatpush1.msra.mxu0 0.0
        %1361 = vmatprep.subr.mxu0 0.0
        %1362 = vmatpush1.msra.mxu0 0.0
        %1363 = vmatprep.subr.mxu0 0.0
        %1364 = vmatpush1.msra.mxu0 0.0
        %1365 = vmatprep.subr.mxu0 0.0
        %1366 = vmatpush1.msra.mxu0 0.0
        %1367 = vmatprep.subr.mxu0 0.0
        %1368 = vmatpush1.msra.mxu0 0.0
        %1369 = vmatprep.subr.mxu0 0.0
        %1370 = vmatpush1.msra.mxu0 0.0
        %1371 = vmatprep.subr.mxu0 0.0
        %1372 = vmatpush1.msra.mxu0 0.0
        %1373 = vmatprep.subr.mxu0 0.0
        %1374 = vmatpush1.msra.mxu0 0.0
        %1375 = vmatprep.subr.mxu0 0.0
        %1376 = vmatpush1.msra.mxu0 0.0
        %1377 = vmatprep.subr.mxu0 0.0
        %1378 = vmatpush1.msra.mxu0 0.0
        %1379 = vmatprep.subr.mxu0 0.0
        %1380 = vmatpush1.msra.mxu0 0.0
        %1381 = vmatprep.subr.mxu0 0.0
        %1382 = vmatpush1.msra.mxu0 0.0
        %1383 = vmatprep.subr.mxu0 0.0
        %1384 = vmatpush1.msra.mxu0 0.0
        %1385 = vmatprep.subr.mxu0 0.0
        %1386 = vmatpush1.msra.mxu0 0.0
        %1387 = vmatprep.subr.mxu0 0.0
        %1388 = vmatpush1.msra.mxu0 0.0
        %1389 = vmatprep.subr.mxu0 0.0
        %1390 = vmatpush1.msra.mxu0 0.0
        %1391 = vmatprep.subr.mxu0 0.0
        %1392 = vmatpush1.msra.mxu0 0.0
        %1393 = vmatprep.subr.mxu0 0.0
        %1394 = vmatpush1.msra.mxu0 0.0
        %1395 = vmatprep.subr.mxu0 0.0
        %1396 = vmatpush1.msra.mxu0 0.0
        %1397 = vmatprep.subr.mxu0 0.0
        %1398 = vmatpush1.msra.mxu0 0.0
        %1399 = vmatprep.subr.mxu0 0.0
        %1400 = vmatpush1.msra.mxu0 0.0
        %1401 = vmatprep.subr.mxu0 0.0
        %1402 = vmatpush1.msra.mxu0 0.0
        %1403 = vmatprep.subr.mxu0 0.0
        %1404 = vmatpush1.msra.mxu0 0.0
        %1405 = vmatprep.subr.mxu0 0.0
        %1406 = vmatpush1.msra.mxu0 0.0
        %1407 = vmatprep.subr.mxu0 0.0
        %1408 = vmatpush1.msra.mxu0 0.0
        %1409 = vmatprep.subr.mxu0 0.0
        %1410 = vmatpush1.msra.mxu0 0.0
        %1411 = vmatprep.subr.mxu0 0.0
        %1412 = vmatpush1.msra.mxu0 0.0
        %1413 = vmatprep.subr.mxu0 0.0
        %1414 = vmatpush1.msra.mxu0 0.0
        %1415 = vmatprep.subr.mxu0 0.0
        %1416 = vmatpush1.msra.mxu0 0.0
        %1417 = vmatprep.mubr.f32.mxu0 0.0
        %1418 = vmatmul.mubr.f32.gmra.mrb[0].mxu0 %v1247
        %v1419 = vpop.f32.mrb[0].mxu0
        %v1420 = vadd.f32 0.0, %v1419
        %v1421 = vpop.f32.mrb[0].mxu0
        %1422 = vmatprep.mubr.f32.mxu0 0.0
        %1423 = vmatmul.mubr.f32.gmra.mrb[0].mxu0 %v1250
        %v1424 = vpop.f32.mrb[0].mxu0
        %v1425 = vadd.f32 0.0, %v1424
        %v1426 = vpop.f32.mrb[0].mxu0
        %1427 = vmatprep.mubr.f32.mxu0 0.0
        %1428 = vmatmul.mubr.f32.gmra.mrb[0].mxu0 %v1253
        %v1429 = vpop.f32.mrb[0].mxu0
        %v1430 = vadd.f32 0.0, %v1429
        %v1431 = vpop.f32.mrb[0].mxu0
        %1432 = vmatprep.mubr.f32.mxu0 0.0
        %1433 = vmatmul.mubr.f32.gmra.mrb[0].mxu0 %v1256
        %v1434 = vpop.f32.mrb[0].mxu0
        %v1435 = vadd.f32 0.0, %v1434
        %v1436 = vpop.f32.mrb[0].mxu0
        %1437 = vdwg.mxu0
        %v1438 = vadd.f32 %v1220, %v1331
        %v1439 = vadd.f32 %v1221, %v1333
        %v1440 = vadd.f32 %v1222, %v1420
        %v1441 = vadd.f32 %v1223, %v1337
        %v1442 = vadd.f32 %v1224, %v1339
        %v1443 = vadd.f32 %v1225, %v1425
        %v1444 = vadd.f32 %v1226, %v1343
        %v1445 = vadd.f32 %v1227, %v1345
        %v1446 = vadd.f32 %v1228, %v1430
        %v1447 = vadd.f32 %v1229, %v1349
        %v1448 = vadd.f32 %v1230, %v1351
        %v1449 = vadd.f32 %v1231, %v1435
        %s1450 = scalar_lea.vmem %s1, 192
        %v1451 = vld [vmem:[%s1450] sm:$0xff]
        %v1452 = vld [vmem:[%s1450 + $0x8] sm:$0xff]
        %v1453 = vld [vmem:[%s1450 + $0x10] sm:$0xff]
        %v1454 = vld [vmem:[%s1450 + $0x18] sm:$0xff]
        %1455 = vrot.lane.b32.xlu0 %v169, 92
        %v1456 = vpop.permute.xlu0 %1455
        %1457 = vrot.lane.b32.xlu0 %v182, 92
        %v1458 = vpop.permute.xlu0 %1457
        %1459 = vrot.lane.b32.xlu0 %v170, 92
        %v1460 = vpop.permute.xlu0 %1459
        %vm1461 = vcmask 752640
        %v1462 = vsel %vm1461, %v1456, %v1458
        %v1463 = vsel %vm1461, %v1458, %v1460
        %v1465 = vsel %vm192, %v1451, 0
        %v1468 = vsel %vm192, %v1452, 0
        %v1471 = vsel %vm192, %v1453, 0
        %v1474 = vsel %vm192, %v1454, 0
        %v1476 = vsel %vm205, %v1462, 0
        %v1478 = vsel %vm205, %v1463, 0
        %v1480 = vsel %vm205, %v1460, 0
        %1482 = vmatprep.subr.mxu0 %v1478
        %1483 = vmatpush1.msra.mxu0 %v1476
        %1484 = vmatprep.subr.mxu0 0.0
        %1485 = vmatpush1.msra.mxu0 0.0
        %1486 = vmatprep.subr.mxu0 0.0
        %1487 = vmatpush1.msra.mxu0 0.0
        %1488 = vmatprep.subr.mxu0 0.0
        %1489 = vmatpush1.msra.mxu0 0.0
        %1490 = vmatprep.subr.mxu0 0.0
        %1491 = vmatpush1.msra.mxu0 0.0
        %1492 = vmatprep.subr.mxu0 0.0
        %1493 = vmatpush1.msra.mxu0 0.0
        %1494 = vmatprep.subr.mxu0 0.0
        %1495 = vmatpush1.msra.mxu0 0.0
        %1496 = vmatprep.subr.mxu0 0.0
        %1497 = vmatpush1.msra.mxu0 0.0
        %1498 = vmatprep.subr.mxu0 0.0
        %1499 = vmatpush1.msra.mxu0 0.0
        %1500 = vmatprep.subr.mxu0 0.0
        %1501 = vmatpush1.msra.mxu0 0.0
        %1502 = vmatprep.subr.mxu0 0.0
        %1503 = vmatpush1.msra.mxu0 0.0
        %1504 = vmatprep.subr.mxu0 0.0
        %1505 = vmatpush1.msra.mxu0 0.0
        %1506 = vmatprep.subr.mxu0 0.0
        %1507 = vmatpush1.msra.mxu0 0.0
        %1508 = vmatprep.subr.mxu0 0.0
        %1509 = vmatpush1.msra.mxu0 0.0
        %1510 = vmatprep.subr.mxu0 0.0
        %1511 = vmatpush1.msra.mxu0 0.0
        %1512 = vmatprep.subr.mxu0 0.0
        %1513 = vmatpush1.msra.mxu0 0.0
        %1514 = vmatprep.subr.mxu0 0.0
        %1515 = vmatpush1.msra.mxu0 0.0
        %1516 = vmatprep.subr.mxu0 0.0
        %1517 = vmatpush1.msra.mxu0 0.0
        %1518 = vmatprep.subr.mxu0 0.0
        %1519 = vmatpush1.msra.mxu0 0.0
        %1520 = vmatprep.subr.mxu0 0.0
        %1521 = vmatpush1.msra.mxu0 0.0
        %1522 = vmatprep.subr.mxu0 0.0
        %1523 = vmatpush1.msra.mxu0 0.0
        %1524 = vmatprep.subr.mxu0 0.0
        %1525 = vmatpush1.msra.mxu0 0.0
        %1526 = vmatprep.subr.mxu0 0.0
        %1527 = vmatpush1.msra.mxu0 0.0
        %1528 = vmatprep.subr.mxu0 0.0
        %1529 = vmatpush1.msra.mxu0 0.0
        %1530 = vmatprep.subr.mxu0 0.0
        %1531 = vmatpush1.msra.mxu0 0.0
        %1532 = vmatprep.subr.mxu0 0.0
        %1533 = vmatpush1.msra.mxu0 0.0
        %1534 = vmatprep.subr.mxu0 0.0
        %1535 = vmatpush1.msra.mxu0 0.0
        %1536 = vmatprep.subr.mxu0 0.0
        %1537 = vmatpush1.msra.mxu0 0.0
        %1538 = vmatprep.subr.mxu0 0.0
        %1539 = vmatpush1.msra.mxu0 0.0
        %1540 = vmatprep.subr.mxu0 0.0
        %1541 = vmatpush1.msra.mxu0 0.0
        %1542 = vmatprep.subr.mxu0 0.0
        %1543 = vmatpush1.msra.mxu0 0.0
        %1544 = vmatprep.subr.mxu0 0.0
        %1545 = vmatpush1.msra.mxu0 0.0
        %1546 = vmatprep.mubr.f32.mxu0 0.0
        %1547 = vmatmul.mubr.f32.gmra.mrb[0].mxu0 %v1465
        %v1548 = vpop.f32.mrb[0].mxu0
        %v1549 = vadd.f32 0.0, %v1548
        %v1550 = vpop.f32.mrb[0].mxu0
        %v1551 = vadd.f32 0.0, %v1550
        %1552 = vmatprep.mubr.f32.mxu0 0.0
        %1553 = vmatmul.mubr.f32.gmra.mrb[0].mxu0 %v1468
        %v1554 = vpop.f32.mrb[0].mxu0
        %v1555 = vadd.f32 0.0, %v1554
        %v1556 = vpop.f32.mrb[0].mxu0
        %v1557 = vadd.f32 0.0, %v1556
        %1558 = vmatprep.mubr.f32.mxu0 0.0
        %1559 = vmatmul.mubr.f32.gmra.mrb[0].mxu0 %v1471
        %v1560 = vpop.f32.mrb[0].mxu0
        %v1561 = vadd.f32 0.0, %v1560
        %v1562 = vpop.f32.mrb[0].mxu0
        %v1563 = vadd.f32 0.0, %v1562
        %1564 = vmatprep.mubr.f32.mxu0 0.0
        %1565 = vmatmul.mubr.f32.gmra.mrb[0].mxu0 %v1474
        %v1566 = vpop.f32.mrb[0].mxu0
        %v1567 = vadd.f32 0.0, %v1566
        %v1568 = vpop.f32.mrb[0].mxu0
        %v1569 = vadd.f32 0.0, %v1568
        %1570 = vdwg.mxu0
        %1571 = vmatprep.subr.mxu0 0.0
        %1572 = vmatpush1.msra.mxu0 %v1480
        %1573 = vmatprep.subr.mxu0 0.0
        %1574 = vmatpush1.msra.mxu0 0.0
        %1575 = vmatprep.subr.mxu0 0.0
        %1576 = vmatpush1.msra.mxu0 0.0
        %1577 = vmatprep.subr.mxu0 0.0
        %1578 = vmatpush1.msra.mxu0 0.0
        %1579 = vmatprep.subr.mxu0 0.0
        %1580 = vmatpush1.msra.mxu0 0.0
        %1581 = vmatprep.subr.mxu0 0.0
        %1582 = vmatpush1.msra.mxu0 0.0
        %1583 = vmatprep.subr.mxu0 0.0
        %1584 = vmatpush1.msra.mxu0 0.0
        %1585 = vmatprep.subr.mxu0 0.0
        %1586 = vmatpush1.msra.mxu0 0.0
        %1587 = vmatprep.subr.mxu0 0.0
        %1588 = vmatpush1.msra.mxu0 0.0
        %1589 = vmatprep.subr.mxu0 0.0
        %1590 = vmatpush1.msra.mxu0 0.0
        %1591 = vmatprep.subr.mxu0 0.0
        %1592 = vmatpush1.msra.mxu0 0.0
        %1593 = vmatprep.subr.mxu0 0.0
        %1594 = vmatpush1.msra.mxu0 0.0
        %1595 = vmatprep.subr.mxu0 0.0
        %1596 = vmatpush1.msra.mxu0 0.0
        %1597 = vmatprep.subr.mxu0 0.0
        %1598 = vmatpush1.msra.mxu0 0.0
        %1599 = vmatprep.subr.mxu0 0.0
        %1600 = vmatpush1.msra.mxu0 0.0
        %1601 = vmatprep.subr.mxu0 0.0
        %1602 = vmatpush1.msra.mxu0 0.0
        %1603 = vmatprep.subr.mxu0 0.0
        %1604 = vmatpush1.msra.mxu0 0.0
        %1605 = vmatprep.subr.mxu0 0.0
        %1606 = vmatpush1.msra.mxu0 0.0
        %1607 = vmatprep.subr.mxu0 0.0
        %1608 = vmatpush1.msra.mxu0 0.0
        %1609 = vmatprep.subr.mxu0 0.0
        %1610 = vmatpush1.msra.mxu0 0.0
        %1611 = vmatprep.subr.mxu0 0.0
        %1612 = vmatpush1.msra.mxu0 0.0
        %1613 = vmatprep.subr.mxu0 0.0
        %1614 = vmatpush1.msra.mxu0 0.0
        %1615 = vmatprep.subr.mxu0 0.0
        %1616 = vmatpush1.msra.mxu0 0.0
        %1617 = vmatprep.subr.mxu0 0.0
        %1618 = vmatpush1.msra.mxu0 0.0
        %1619 = vmatprep.subr.mxu0 0.0
        %1620 = vmatpush1.msra.mxu0 0.0
        %1621 = vmatprep.subr.mxu0 0.0
        %1622 = vmatpush1.msra.mxu0 0.0
        %1623 = vmatprep.subr.mxu0 0.0
        %1624 = vmatpush1.msra.mxu0 0.0
        %1625 = vmatprep.subr.mxu0 0.0
        %1626 = vmatpush1.msra.mxu0 0.0
        %1627 = vmatprep.subr.mxu0 0.0
        %1628 = vmatpush1.msra.mxu0 0.0
        %1629 = vmatprep.subr.mxu0 0.0
        %1630 = vmatpush1.msra.mxu0 0.0
        %1631 = vmatprep.subr.mxu0 0.0
        %1632 = vmatpush1.msra.mxu0 0.0
        %1633 = vmatprep.subr.mxu0 0.0
        %1634 = vmatpush1.msra.mxu0 0.0
        %1635 = vmatprep.mubr.f32.mxu0 0.0
        %1636 = vmatmul.mubr.f32.gmra.mrb[0].mxu0 %v1465
        %v1637 = vpop.f32.mrb[0].mxu0
        %v1638 = vadd.f32 0.0, %v1637
        %v1639 = vpop.f32.mrb[0].mxu0
        %1640 = vmatprep.mubr.f32.mxu0 0.0
        %1641 = vmatmul.mubr.f32.gmra.mrb[0].mxu0 %v1468
        %v1642 = vpop.f32.mrb[0].mxu0
        %v1643 = vadd.f32 0.0, %v1642
        %v1644 = vpop.f32.mrb[0].mxu0
        %1645 = vmatprep.mubr.f32.mxu0 0.0
        %1646 = vmatmul.mubr.f32.gmra.mrb[0].mxu0 %v1471
        %v1647 = vpop.f32.mrb[0].mxu0
        %v1648 = vadd.f32 0.0, %v1647
        %v1649 = vpop.f32.mrb[0].mxu0
        %1650 = vmatprep.mubr.f32.mxu0 0.0
        %1651 = vmatmul.mubr.f32.gmra.mrb[0].mxu0 %v1474
        %v1652 = vpop.f32.mrb[0].mxu0
        %v1653 = vadd.f32 0.0, %v1652
        %v1654 = vpop.f32.mrb[0].mxu0
        %1655 = vdwg.mxu0
        %v1656 = vadd.f32 %v1438, %v1549
        %v1657 = vadd.f32 %v1439, %v1551
        %v1658 = vadd.f32 %v1440, %v1638
        %v1659 = vadd.f32 %v1441, %v1555
        %v1660 = vadd.f32 %v1442, %v1557
        %v1661 = vadd.f32 %v1443, %v1643
        %v1662 = vadd.f32 %v1444, %v1561
        %v1663 = vadd.f32 %v1445, %v1563
        %v1664 = vadd.f32 %v1446, %v1648
        %v1665 = vadd.f32 %v1447, %v1567
        %v1666 = vadd.f32 %v1448, %v1569
        %v1667 = vadd.f32 %v1449, %v1653
        %s1668 = scalar_lea.vmem %s1, 224
        %v1669 = vld [vmem:[%s1668] sm:$0xff]
        %v1670 = vld [vmem:[%s1668 + $0x8] sm:$0xff]
        %v1671 = vld [vmem:[%s1668 + $0x10] sm:$0xff]
        %v1672 = vld [vmem:[%s1668 + $0x18] sm:$0xff]
        %1673 = vrot.lane.b32.xlu0 %v169, 91
        %v1674 = vpop.permute.xlu0 %1673
        %1675 = vrot.lane.b32.xlu0 %v182, 91
        %v1676 = vpop.permute.xlu0 %1675
        %1677 = vrot.lane.b32.xlu0 %v170, 91
        %v1678 = vpop.permute.xlu0 %1677
        %vm1679 = vcmask 744448
        %v1680 = vsel %vm1679, %v1674, %v1676
        %v1681 = vsel %vm1679, %v1676, %v1678
        %v1683 = vsel %vm192, %v1669, 0
        %v1686 = vsel %vm192, %v1670, 0
        %v1689 = vsel %vm192, %v1671, 0
        %v1692 = vsel %vm192, %v1672, 0
        %v1694 = vsel %vm205, %v1680, 0
        %v1696 = vsel %vm205, %v1681, 0
        %v1698 = vsel %vm205, %v1678, 0
        %1700 = vmatprep.subr.mxu0 %v1696
        %1701 = vmatpush1.msra.mxu0 %v1694
        %1702 = vmatprep.subr.mxu0 0.0
        %1703 = vmatpush1.msra.mxu0 0.0
        %1704 = vmatprep.subr.mxu0 0.0
        %1705 = vmatpush1.msra.mxu0 0.0
        %1706 = vmatprep.subr.mxu0 0.0
        %1707 = vmatpush1.msra.mxu0 0.0
        %1708 = vmatprep.subr.mxu0 0.0
        %1709 = vmatpush1.msra.mxu0 0.0
        %1710 = vmatprep.subr.mxu0 0.0
        %1711 = vmatpush1.msra.mxu0 0.0
        %1712 = vmatprep.subr.mxu0 0.0
        %1713 = vmatpush1.msra.mxu0 0.0
        %1714 = vmatprep.subr.mxu0 0.0
        %1715 = vmatpush1.msra.mxu0 0.0
        %1716 = vmatprep.subr.mxu0 0.0
        %1717 = vmatpush1.msra.mxu0 0.0
        %1718 = vmatprep.subr.mxu0 0.0
        %1719 = vmatpush1.msra.mxu0 0.0
        %1720 = vmatprep.subr.mxu0 0.0
        %1721 = vmatpush1.msra.mxu0 0.0
        %1722 = vmatprep.subr.mxu0 0.0
        %1723 = vmatpush1.msra.mxu0 0.0
        %1724 = vmatprep.subr.mxu0 0.0
        %1725 = vmatpush1.msra.mxu0 0.0
        %1726 = vmatprep.subr.mxu0 0.0
        %1727 = vmatpush1.msra.mxu0 0.0
        %1728 = vmatprep.subr.mxu0 0.0
        %1729 = vmatpush1.msra.mxu0 0.0
        %1730 = vmatprep.subr.mxu0 0.0
        %1731 = vmatpush1.msra.mxu0 0.0
        %1732 = vmatprep.subr.mxu0 0.0
        %1733 = vmatpush1.msra.mxu0 0.0
        %1734 = vmatprep.subr.mxu0 0.0
        %1735 = vmatpush1.msra.mxu0 0.0
        %1736 = vmatprep.subr.mxu0 0.0
        %1737 = vmatpush1.msra.mxu0 0.0
        %1738 = vmatprep.subr.mxu0 0.0
        %1739 = vmatpush1.msra.mxu0 0.0
        %1740 = vmatprep.subr.mxu0 0.0
        %1741 = vmatpush1.msra.mxu0 0.0
        %1742 = vmatprep.subr.mxu0 0.0
        %1743 = vmatpush1.msra.mxu0 0.0
        %1744 = vmatprep.subr.mxu0 0.0
        %1745 = vmatpush1.msra.mxu0 0.0
        %1746 = vmatprep.subr.mxu0 0.0
        %1747 = vmatpush1.msra.mxu0 0.0
        %1748 = vmatprep.subr.mxu0 0.0
        %1749 = vmatpush1.msra.mxu0 0.0
        %1750 = vmatprep.subr.mxu0 0.0
        %1751 = vmatpush1.msra.mxu0 0.0
        %1752 = vmatprep.subr.mxu0 0.0
        %1753 = vmatpush1.msra.mxu0 0.0
        %1754 = vmatprep.subr.mxu0 0.0
        %1755 = vmatpush1.msra.mxu0 0.0
        %1756 = vmatprep.subr.mxu0 0.0
        %1757 = vmatpush1.msra.mxu0 0.0
        %1758 = vmatprep.subr.mxu0 0.0
        %1759 = vmatpush1.msra.mxu0 0.0
        %1760 = vmatprep.subr.mxu0 0.0
        %1761 = vmatpush1.msra.mxu0 0.0
        %1762 = vmatprep.subr.mxu0 0.0
        %1763 = vmatpush1.msra.mxu0 0.0
        %1764 = vmatprep.mubr.f32.mxu0 0.0
        %1765 = vmatmul.mubr.f32.gmra.mrb[0].mxu0 %v1683
        %v1766 = vpop.f32.mrb[0].mxu0
        %v1767 = vadd.f32 0.0, %v1766
        %v1768 = vpop.f32.mrb[0].mxu0
        %v1769 = vadd.f32 0.0, %v1768
        %1770 = vmatprep.mubr.f32.mxu0 0.0
        %1771 = vmatmul.mubr.f32.gmra.mrb[0].mxu0 %v1686
        %v1772 = vpop.f32.mrb[0].mxu0
        %v1773 = vadd.f32 0.0, %v1772
        %v1774 = vpop.f32.mrb[0].mxu0
        %v1775 = vadd.f32 0.0, %v1774
        %1776 = vmatprep.mubr.f32.mxu0 0.0
        %1777 = vmatmul.mubr.f32.gmra.mrb[0].mxu0 %v1689
        %v1778 = vpop.f32.mrb[0].mxu0
        %v1779 = vadd.f32 0.0, %v1778
        %v1780 = vpop.f32.mrb[0].mxu0
        %v1781 = vadd.f32 0.0, %v1780
        %1782 = vmatprep.mubr.f32.mxu0 0.0
        %1783 = vmatmul.mubr.f32.gmra.mrb[0].mxu0 %v1692
        %v1784 = vpop.f32.mrb[0].mxu0
        %v1785 = vadd.f32 0.0, %v1784
        %v1786 = vpop.f32.mrb[0].mxu0
        %v1787 = vadd.f32 0.0, %v1786
        %1788 = vdwg.mxu0
        %1789 = vmatprep.subr.mxu0 0.0
        %1790 = vmatpush1.msra.mxu0 %v1698
        %1791 = vmatprep.subr.mxu0 0.0
        %1792 = vmatpush1.msra.mxu0 0.0
        %1793 = vmatprep.subr.mxu0 0.0
        %1794 = vmatpush1.msra.mxu0 0.0
        %1795 = vmatprep.subr.mxu0 0.0
        %1796 = vmatpush1.msra.mxu0 0.0
        %1797 = vmatprep.subr.mxu0 0.0
        %1798 = vmatpush1.msra.mxu0 0.0
        %1799 = vmatprep.subr.mxu0 0.0
        %1800 = vmatpush1.msra.mxu0 0.0
        %1801 = vmatprep.subr.mxu0 0.0
        %1802 = vmatpush1.msra.mxu0 0.0
        %1803 = vmatprep.subr.mxu0 0.0
        %1804 = vmatpush1.msra.mxu0 0.0
        %1805 = vmatprep.subr.mxu0 0.0
        %1806 = vmatpush1.msra.mxu0 0.0
        %1807 = vmatprep.subr.mxu0 0.0
        %1808 = vmatpush1.msra.mxu0 0.0
        %1809 = vmatprep.subr.mxu0 0.0
        %1810 = vmatpush1.msra.mxu0 0.0
        %1811 = vmatprep.subr.mxu0 0.0
        %1812 = vmatpush1.msra.mxu0 0.0
        %1813 = vmatprep.subr.mxu0 0.0
        %1814 = vmatpush1.msra.mxu0 0.0
        %1815 = vmatprep.subr.mxu0 0.0
        %1816 = vmatpush1.msra.mxu0 0.0
        %1817 = vmatprep.subr.mxu0 0.0
        %1818 = vmatpush1.msra.mxu0 0.0
        %1819 = vmatprep.subr.mxu0 0.0
        %1820 = vmatpush1.msra.mxu0 0.0
        %1821 = vmatprep.subr.mxu0 0.0
        %1822 = vmatpush1.msra.mxu0 0.0
        %1823 = vmatprep.subr.mxu0 0.0
        %1824 = vmatpush1.msra.mxu0 0.0
        %1825 = vmatprep.subr.mxu0 0.0
        %1826 = vmatpush1.msra.mxu0 0.0
        %1827 = vmatprep.subr.mxu0 0.0
        %1828 = vmatpush1.msra.mxu0 0.0
        %1829 = vmatprep.subr.mxu0 0.0
        %1830 = vmatpush1.msra.mxu0 0.0
        %1831 = vmatprep.subr.mxu0 0.0
        %1832 = vmatpush1.msra.mxu0 0.0
        %1833 = vmatprep.subr.mxu0 0.0
        %1834 = vmatpush1.msra.mxu0 0.0
        %1835 = vmatprep.subr.mxu0 0.0
        %1836 = vmatpush1.msra.mxu0 0.0
        %1837 = vmatprep.subr.mxu0 0.0
        %1838 = vmatpush1.msra.mxu0 0.0
        %1839 = vmatprep.subr.mxu0 0.0
        %1840 = vmatpush1.msra.mxu0 0.0
        %1841 = vmatprep.subr.mxu0 0.0
        %1842 = vmatpush1.msra.mxu0 0.0
        %1843 = vmatprep.subr.mxu0 0.0
        %1844 = vmatpush1.msra.mxu0 0.0
        %1845 = vmatprep.subr.mxu0 0.0
        %1846 = vmatpush1.msra.mxu0 0.0
        %1847 = vmatprep.subr.mxu0 0.0
        %1848 = vmatpush1.msra.mxu0 0.0
        %1849 = vmatprep.subr.mxu0 0.0
        %1850 = vmatpush1.msra.mxu0 0.0
        %1851 = vmatprep.subr.mxu0 0.0
        %1852 = vmatpush1.msra.mxu0 0.0
        %1853 = vmatprep.mubr.f32.mxu0 0.0
        %1854 = vmatmul.mubr.f32.gmra.mrb[0].mxu0 %v1683
        %v1855 = vpop.f32.mrb[0].mxu0
        %v1856 = vadd.f32 0.0, %v1855
        %v1857 = vpop.f32.mrb[0].mxu0
        %1858 = vmatprep.mubr.f32.mxu0 0.0
        %1859 = vmatmul.mubr.f32.gmra.mrb[0].mxu0 %v1686
        %v1860 = vpop.f32.mrb[0].mxu0
        %v1861 = vadd.f32 0.0, %v1860
        %v1862 = vpop.f32.mrb[0].mxu0
        %1863 = vmatprep.mubr.f32.mxu0 0.0
        %1864 = vmatmul.mubr.f32.gmra.mrb[0].mxu0 %v1689
        %v1865 = vpop.f32.mrb[0].mxu0
        %v1866 = vadd.f32 0.0, %v1865
        %v1867 = vpop.f32.mrb[0].mxu0
        %1868 = vmatprep.mubr.f32.mxu0 0.0
        %1869 = vmatmul.mubr.f32.gmra.mrb[0].mxu0 %v1692
        %v1870 = vpop.f32.mrb[0].mxu0
        %v1871 = vadd.f32 0.0, %v1870
        %v1872 = vpop.f32.mrb[0].mxu0
        %1873 = vdwg.mxu0
        %v1874 = vadd.f32 %v1656, %v1767
        %v1875 = vadd.f32 %v1657, %v1769
        %v1876 = vadd.f32 %v1658, %v1856
        %v1877 = vadd.f32 %v1659, %v1773
        %v1878 = vadd.f32 %v1660, %v1775
        %v1879 = vadd.f32 %v1661, %v1861
        %v1880 = vadd.f32 %v1662, %v1779
        %v1881 = vadd.f32 %v1663, %v1781
        %v1882 = vadd.f32 %v1664, %v1866
        %v1883 = vadd.f32 %v1665, %v1785
        %v1884 = vadd.f32 %v1666, %v1787
        %v1885 = vadd.f32 %v1667, %v1871
        %s1886 = scalar_lea.vmem %s1, 256
        %v1887 = vld [vmem:[%s1886] sm:$0xff]
        %v1888 = vld [vmem:[%s1886 + $0x8] sm:$0xff]
        %v1889 = vld [vmem:[%s1886 + $0x10] sm:$0xff]
        %v1890 = vld [vmem:[%s1886 + $0x18] sm:$0xff]
        %1891 = vrot.lane.b32.xlu0 %v169, 90
        %v1892 = vpop.permute.xlu0 %1891
        %1893 = vrot.lane.b32.xlu0 %v182, 90
        %v1894 = vpop.permute.xlu0 %1893
        %1895 = vrot.lane.b32.xlu0 %v170, 90
        %v1896 = vpop.permute.xlu0 %1895
        %vm1897 = vcmask 736256
        %v1898 = vsel %vm1897, %v1892, %v1894
        %v1899 = vsel %vm1897, %v1894, %v1896
        %v1901 = vsel %vm192, %v1887, 0
        %v1904 = vsel %vm192, %v1888, 0
        %v1907 = vsel %vm192, %v1889, 0
        %v1910 = vsel %vm192, %v1890, 0
        %v1912 = vsel %vm205, %v1898, 0
        %v1914 = vsel %vm205, %v1899, 0
        %v1916 = vsel %vm205, %v1896, 0
        %1918 = vmatprep.subr.mxu0 %v1914
        %1919 = vmatpush1.msra.mxu0 %v1912
        %1920 = vmatprep.subr.mxu0 0.0
        %1921 = vmatpush1.msra.mxu0 0.0
        %1922 = vmatprep.subr.mxu0 0.0
        %1923 = vmatpush1.msra.mxu0 0.0
        %1924 = vmatprep.subr.mxu0 0.0
        %1925 = vmatpush1.msra.mxu0 0.0
        %1926 = vmatprep.subr.mxu0 0.0
        %1927 = vmatpush1.msra.mxu0 0.0
        %1928 = vmatprep.subr.mxu0 0.0
        %1929 = vmatpush1.msra.mxu0 0.0
        %1930 = vmatprep.subr.mxu0 0.0
        %1931 = vmatpush1.msra.mxu0 0.0
        %1932 = vmatprep.subr.mxu0 0.0
        %1933 = vmatpush1.msra.mxu0 0.0
        %1934 = vmatprep.subr.mxu0 0.0
        %1935 = vmatpush1.msra.mxu0 0.0
        %1936 = vmatprep.subr.mxu0 0.0
        %1937 = vmatpush1.msra.mxu0 0.0
        %1938 = vmatprep.subr.mxu0 0.0
        %1939 = vmatpush1.msra.mxu0 0.0
        %1940 = vmatprep.subr.mxu0 0.0
        %1941 = vmatpush1.msra.mxu0 0.0
        %1942 = vmatprep.subr.mxu0 0.0
        %1943 = vmatpush1.msra.mxu0 0.0
        %1944 = vmatprep.subr.mxu0 0.0
        %1945 = vmatpush1.msra.mxu0 0.0
        %1946 = vmatprep.subr.mxu0 0.0
        %1947 = vmatpush1.msra.mxu0 0.0
        %1948 = vmatprep.subr.mxu0 0.0
        %1949 = vmatpush1.msra.mxu0 0.0
        %1950 = vmatprep.subr.mxu0 0.0
        %1951 = vmatpush1.msra.mxu0 0.0
        %1952 = vmatprep.subr.mxu0 0.0
        %1953 = vmatpush1.msra.mxu0 0.0
        %1954 = vmatprep.subr.mxu0 0.0
        %1955 = vmatpush1.msra.mxu0 0.0
        %1956 = vmatprep.subr.mxu0 0.0
        %1957 = vmatpush1.msra.mxu0 0.0
        %1958 = vmatprep.subr.mxu0 0.0
        %1959 = vmatpush1.msra.mxu0 0.0
        %1960 = vmatprep.subr.mxu0 0.0
        %1961 = vmatpush1.msra.mxu0 0.0
        %1962 = vmatprep.subr.mxu0 0.0
        %1963 = vmatpush1.msra.mxu0 0.0
        %1964 = vmatprep.subr.mxu0 0.0
        %1965 = vmatpush1.msra.mxu0 0.0
        %1966 = vmatprep.subr.mxu0 0.0
        %1967 = vmatpush1.msra.mxu0 0.0
        %1968 = vmatprep.subr.mxu0 0.0
        %1969 = vmatpush1.msra.mxu0 0.0
        %1970 = vmatprep.subr.mxu0 0.0
        %1971 = vmatpush1.msra.mxu0 0.0
        %1972 = vmatprep.subr.mxu0 0.0
        %1973 = vmatpush1.msra.mxu0 0.0
        %1974 = vmatprep.subr.mxu0 0.0
        %1975 = vmatpush1.msra.mxu0 0.0
        %1976 = vmatprep.subr.mxu0 0.0
        %1977 = vmatpush1.msra.mxu0 0.0
        %1978 = vmatprep.subr.mxu0 0.0
        %1979 = vmatpush1.msra.mxu0 0.0
        %1980 = vmatprep.subr.mxu0 0.0
        %1981 = vmatpush1.msra.mxu0 0.0
        %1982 = vmatprep.mubr.f32.mxu0 0.0
        %1983 = vmatmul.mubr.f32.gmra.mrb[0].mxu0 %v1901
        %v1984 = vpop.f32.mrb[0].mxu0
        %v1985 = vadd.f32 0.0, %v1984
        %v1986 = vpop.f32.mrb[0].mxu0
        %v1987 = vadd.f32 0.0, %v1986
        %1988 = vmatprep.mubr.f32.mxu0 0.0
        %1989 = vmatmul.mubr.f32.gmra.mrb[0].mxu0 %v1904
        %v1990 = vpop.f32.mrb[0].mxu0
        %v1991 = vadd.f32 0.0, %v1990
        %v1992 = vpop.f32.mrb[0].mxu0
        %v1993 = vadd.f32 0.0, %v1992
        %1994 = vmatprep.mubr.f32.mxu0 0.0
        %1995 = vmatmul.mubr.f32.gmra.mrb[0].mxu0 %v1907
        %v1996 = vpop.f32.mrb[0].mxu0
        %v1997 = vadd.f32 0.0, %v1996
        %v1998 = vpop.f32.mrb[0].mxu0
        %v1999 = vadd.f32 0.0, %v1998
        %2000 = vmatprep.mubr.f32.mxu0 0.0
        %2001 = vmatmul.mubr.f32.gmra.mrb[0].mxu0 %v1910
        %v2002 = vpop.f32.mrb[0].mxu0
        %v2003 = vadd.f32 0.0, %v2002
        %v2004 = vpop.f32.mrb[0].mxu0
        %v2005 = vadd.f32 0.0, %v2004
        %2006 = vdwg.mxu0
        %2007 = vmatprep.subr.mxu0 0.0
        %2008 = vmatpush1.msra.mxu0 %v1916
        %2009 = vmatprep.subr.mxu0 0.0
        %2010 = vmatpush1.msra.mxu0 0.0
        %2011 = vmatprep.subr.mxu0 0.0
        %2012 = vmatpush1.msra.mxu0 0.0
        %2013 = vmatprep.subr.mxu0 0.0
        %2014 = vmatpush1.msra.mxu0 0.0
        %2015 = vmatprep.subr.mxu0 0.0
        %2016 = vmatpush1.msra.mxu0 0.0
        %2017 = vmatprep.subr.mxu0 0.0
        %2018 = vmatpush1.msra.mxu0 0.0
        %2019 = vmatprep.subr.mxu0 0.0
        %2020 = vmatpush1.msra.mxu0 0.0
        %2021 = vmatprep.subr.mxu0 0.0
        %2022 = vmatpush1.msra.mxu0 0.0
        %2023 = vmatprep.subr.mxu0 0.0
        %2024 = vmatpush1.msra.mxu0 0.0
        %2025 = vmatprep.subr.mxu0 0.0
        %2026 = vmatpush1.msra.mxu0 0.0
        %2027 = vmatprep.subr.mxu0 0.0
        %2028 = vmatpush1.msra.mxu0 0.0
        %2029 = vmatprep.subr.mxu0 0.0
        %2030 = vmatpush1.msra.mxu0 0.0
        %2031 = vmatprep.subr.mxu0 0.0
        %2032 = vmatpush1.msra.mxu0 0.0
        %2033 = vmatprep.subr.mxu0 0.0
        %2034 = vmatpush1.msra.mxu0 0.0
        %2035 = vmatprep.subr.mxu0 0.0
        %2036 = vmatpush1.msra.mxu0 0.0
        %2037 = vmatprep.subr.mxu0 0.0
        %2038 = vmatpush1.msra.mxu0 0.0
        %2039 = vmatprep.subr.mxu0 0.0
        %2040 = vmatpush1.msra.mxu0 0.0
        %2041 = vmatprep.subr.mxu0 0.0
        %2042 = vmatpush1.msra.mxu0 0.0
        %2043 = vmatprep.subr.mxu0 0.0
        %2044 = vmatpush1.msra.mxu0 0.0
        %2045 = vmatprep.subr.mxu0 0.0
        %2046 = vmatpush1.msra.mxu0 0.0
        %2047 = vmatprep.subr.mxu0 0.0
        %2048 = vmatpush1.msra.mxu0 0.0
        %2049 = vmatprep.subr.mxu0 0.0
        %2050 = vmatpush1.msra.mxu0 0.0
        %2051 = vmatprep.subr.mxu0 0.0
        %2052 = vmatpush1.msra.mxu0 0.0
        %2053 = vmatprep.subr.mxu0 0.0
        %2054 = vmatpush1.msra.mxu0 0.0
        %2055 = vmatprep.subr.mxu0 0.0
        %2056 = vmatpush1.msra.mxu0 0.0
        %2057 = vmatprep.subr.mxu0 0.0
        %2058 = vmatpush1.msra.mxu0 0.0
        %2059 = vmatprep.subr.mxu0 0.0
        %2060 = vmatpush1.msra.mxu0 0.0
        %2061 = vmatprep.subr.mxu0 0.0
        %2062 = vmatpush1.msra.mxu0 0.0
        %2063 = vmatprep.subr.mxu0 0.0
        %2064 = vmatpush1.msra.mxu0 0.0
        %2065 = vmatprep.subr.mxu0 0.0
        %2066 = vmatpush1.msra.mxu0 0.0
        %2067 = vmatprep.subr.mxu0 0.0
        %2068 = vmatpush1.msra.mxu0 0.0
        %2069 = vmatprep.subr.mxu0 0.0
        %2070 = vmatpush1.msra.mxu0 0.0
        %2071 = vmatprep.mubr.f32.mxu0 0.0
        %2072 = vmatmul.mubr.f32.gmra.mrb[0].mxu0 %v1901
        %v2073 = vpop.f32.mrb[0].mxu0
        %v2074 = vadd.f32 0.0, %v2073
        %v2075 = vpop.f32.mrb[0].mxu0
        %2076 = vmatprep.mubr.f32.mxu0 0.0
        %2077 = vmatmul.mubr.f32.gmra.mrb[0].mxu0 %v1904
        %v2078 = vpop.f32.mrb[0].mxu0
        %v2079 = vadd.f32 0.0, %v2078
        %v2080 = vpop.f32.mrb[0].mxu0
        %2081 = vmatprep.mubr.f32.mxu0 0.0
        %2082 = vmatmul.mubr.f32.gmra.mrb[0].mxu0 %v1907
        %v2083 = vpop.f32.mrb[0].mxu0
        %v2084 = vadd.f32 0.0, %v2083
        %v2085 = vpop.f32.mrb[0].mxu0
        %2086 = vmatprep.mubr.f32.mxu0 0.0
        %2087 = vmatmul.mubr.f32.gmra.mrb[0].mxu0 %v1910
        %v2088 = vpop.f32.mrb[0].mxu0
        %v2089 = vadd.f32 0.0, %v2088
        %v2090 = vpop.f32.mrb[0].mxu0
        %2091 = vdwg.mxu0
        %v2092 = vadd.f32 %v1874, %v1985
        %v2093 = vadd.f32 %v1875, %v1987
        %v2094 = vadd.f32 %v1876, %v2074
        %v2095 = vadd.f32 %v1877, %v1991
        %v2096 = vadd.f32 %v1878, %v1993
        %v2097 = vadd.f32 %v1879, %v2079
        %v2098 = vadd.f32 %v1880, %v1997
        %v2099 = vadd.f32 %v1881, %v1999
        %v2100 = vadd.f32 %v1882, %v2084
        %v2101 = vadd.f32 %v1883, %v2003
        %v2102 = vadd.f32 %v1884, %v2005
        %v2103 = vadd.f32 %v1885, %v2089
        %v2104 = vld [vmem:[%s2] sm:$0x1]
        %v2105 = vlaneseq
        %v2106 = vshrl.u32 %v2105, 7
        %v2107 = vsub.s32 0, %v2106
        %v2108 = vrot.slane %v2104, %v2107
        %2110 = vbcast.lane.b32.xlu0 %v2108, 256
        %v2111 = vpop.permute.xlu0 %2110
        %s2113 = sor.u32 256, 8
        %2114 = vbcast.lane.b32.xlu0 %v2108, %s2113
        %v2115 = vpop.permute.xlu0 %2114
        %s2117 = sor.u32 256, 16
        %2118 = vbcast.lane.b32.xlu0 %v2108, %s2117
        %v2119 = vpop.permute.xlu0 %2118
        %s2121 = sor.u32 256, 24
        %2122 = vbcast.lane.b32.xlu0 %v2108, %s2121
        %v2123 = vpop.permute.xlu0 %2122
        %v2124 = vadd.f32 %v2092, %v2111
        %v2125 = vadd.f32 %v2093, %v2111
        %v2126 = vadd.f32 %v2094, %v2111
        %v2127 = vadd.f32 %v2095, %v2115
        %v2128 = vadd.f32 %v2096, %v2115
        %v2129 = vadd.f32 %v2097, %v2115
        %v2130 = vadd.f32 %v2098, %v2119
        %v2131 = vadd.f32 %v2099, %v2119
        %v2132 = vadd.f32 %v2100, %v2119
        %v2133 = vadd.f32 %v2101, %v2123
        %v2134 = vadd.f32 %v2102, %v2123
        %v2135 = vadd.f32 %v2103, %v2123
        %2136 = vst [vmem:[%s163] sm:$0xff] %v2124
        %2137 = vst [vmem:[%s163 + $0x8] sm:$0xff] %v2125
        %vm2138 = vcmask 261120
        %2139 = vst.msk [vmem:[%s163 + $0x10] sm:$0xff] %vm2138, %v2126
        %2140 = vst [vmem:[%s163 + $0x18] sm:$0xff] %v2127
        %2141 = vst [vmem:[%s163 + $0x20] sm:$0xff] %v2128
        %2142 = vst.msk [vmem:[%s163 + $0x28] sm:$0xff] %vm2138, %v2129
        %2143 = vst [vmem:[%s163 + $0x30] sm:$0xff] %v2130
        %2144 = vst [vmem:[%s163 + $0x38] sm:$0xff] %v2131
        %2145 = vst.msk [vmem:[%s163 + $0x40] sm:$0xff] %vm2138, %v2132
        %2146 = vst [vmem:[%s163 + $0x48] sm:$0xff] %v2133
        %2147 = vst [vmem:[%s163 + $0x50] sm:$0xff] %v2134
        %2148 = vst.msk [vmem:[%s163 + $0x58] sm:$0xff] %vm2138, %v2135
        %s2149 = sand.u32 %s93, 1
        %s2150 = scalar_lea.sflag [#allocation3], %s2149
        %s2151 = sand.u32 %s93, 1
        %s2152 = smul.addr %s2151, 96
        %s2153 = scalar_lea.vmem [#allocation2], %s2152
        // Predicated region
        $region33: #{tpu_custom_call.1} parent=31 // pred_check
          %p2154 = pneg %p103
        $region34: #{tpu_custom_call.1} parent=31 // pred_check_branch
          %2156 = sbr.rel (%p2154) target = $region36
        $region35: #{tpu_custom_call.1} parent=31 // pred_region
          %s2158 = ssub.s32 1536, 1536
          %2159 = vsyncadd %s2150, %s2158
          %s2160 = smul.addr %s17, 12
          %s2161 = smul.addr %s2160, 128
          %s2162 = scalar_lea.hbm %s3, %s2161
          %s2163 = sshll.u32 %s2153, 4
          %s2164 = int_to_ptr.vmem [resolvable:$true] %s2163
          %2169 = dma.vmem_to_hbm [thread:$0]  %s2164, 1536, %s2162, %s2150, 384, 384, 24
        $region36: #{tpu_custom_call.1} parent=31 // pred_fallthru
          _
      $region32: #{tpu_custom_call.1} parent=5 // pred_fallthru
        _
      %p2170 = scmp.le.s32.totalorder 2, %s12
      // Predicated region
      $region37: #{tpu_custom_call.1} parent=5 // pred_check
        %p2171 = pneg %p2170
      $region38: #{tpu_custom_call.1} parent=5 // pred_check_branch
        %2173 = sbr.rel (%p2171) target = $region40
      $region39: #{tpu_custom_call.1} parent=5 // pred_region
        %s2174 = ssub.s32 %s12, 2
        // Predicated region
        $region41: #{tpu_custom_call.1} parent=39 // pred_check
          %p2175 = pneg %p109
        $region42: #{tpu_custom_call.1} parent=39 // pred_check_branch
          %2177 = sbr.rel (%p2175) target = $region44
        $region43: #{tpu_custom_call.1} parent=39 // pred_region
          %s2178 = sand.u32 %s94, 1
          %s2179 = scalar_lea.sflag [#allocation3], %s2178
          %s2180 = sand.u32 %s94, 1
          %s2181 = smul.addr %s2180, 96
          %s2182 = scalar_lea.vmem [#allocation2], %s2181
          %2183 = dma.done %s2179, 1536
        $region44: #{tpu_custom_call.1} parent=39 // pred_fallthru
          _
      $region40: #{tpu_custom_call.1} parent=5 // pred_fallthru
        _
    $region6: #{tpu_custom_call.1} parent=1 // loop_footer
      %s16 = sadd.s32 1, %s12
    $region7: #{tpu_custom_call.1} parent=1 // loop_footer_branch
      %11 = sbr.rel target = $region3
    $region8: #{tpu_custom_call.1} parent=1 // loop_exit
      _
    %2184 = vsyncpa [#allocation3], 1
    %s2185 = scalar_lea.sflag [#allocation3], 1
    %2186 = vsyncpa %s2185, 1

</llo_original>
